<compile_context>
chip_gen: v6e
topology: v6e:2x2x1
jax: 0.10.0
libtpu: 0.0.40
codegen_flags: <defaults>
</compile_context>

<pallas_src>
import jax
import jax.numpy as jnp
from jax.experimental import pallas as pl
from jax.experimental.pallas import tpu as pltpu

HIDDEN = 768
NUM_CLASSES = 2
OUT_PAD = 128  # lane-dense padded classifier width


def _round_up(v, m):
    return (v + m - 1) // m * m


def _decode_multicat_kernel(x_ref, w1_ref, b1_ref, w2_ref, b2_ref, o_ref):
    # x arrives f32; cast at the MXU feed (cheaper than a wrapper-side cast pass).
    x_b = x_ref[...].astype(jnp.bfloat16)
    # pre_classifier (this chunk of output columns): bf16 operands, f32 accum.
    h = jnp.dot(x_b, w1_ref[...], preferred_element_type=jnp.float32)
    # bias + ReLU in f32 (v5e VPU has no bf16 ALU); eval-mode dropout == identity.
    h = jnp.maximum(h + b1_ref[...], 0.0)
    # classifier partial product for this chunk of hidden rows.
    out = jnp.dot(h.astype(jnp.bfloat16), w2_ref[...],
                  preferred_element_type=jnp.float32)
    # Add b2 exactly once (chunk 0) so the cross-chunk slab sum stays correct.
    chunk0 = (pl.program_id(1) == 0).astype(jnp.float32)
    o_ref[...] = (out + chunk0 * b2_ref[...]).astype(o_ref.dtype)


def prepare_decode_multicat_params(w1, b1, w2, b2):
    """One-time (model-load) weight prep, hoisted out of the decode hot path.

    w1: (768, 768) [in, out] (i.e. torch weight.T), b1: (768,)
    w2: (768, 2)  [in, out] (torch weight.T),       b2: (2,)
    """
    w2f = jnp.asarray(w2, jnp.float32)
    b2f = jnp.asarray(b2, jnp.float32).reshape(1, NUM_CLASSES)
    return {
        "w1": jnp.asarray(w1, jnp.float32).astype(jnp.bfloat16),
        "b1": jnp.asarray(b1, jnp.float32).reshape(1, HIDDEN),
        # Zero-pad classifier to a lane-dense 128-wide output tile.
        "w2": jnp.pad(w2f, ((0, 0), (0, OUT_PAD - NUM_CLASSES))).astype(jnp.bfloat16),
        "b2": jnp.pad(b2f, ((0, 0), (0, OUT_PAD - NUM_CLASSES))),
    }


def decode_multicat(x, params, *, tm=512, out_dtype=jnp.float32):
    """x: (..., 768) f32. params: output of prepare_decode_multicat_params.
    Returns (..., 2) f32 logits."""
    lead = x.shape[:-1]
    assert x.shape[-1] == HIDDEN
    x2 = x.reshape(-1, HIDDEN)
    B = x2.shape[0]

    # ---- batch tiling (minimal padding) ------------------------------------
    tm = _round_up(tm, 16)
    if B <= tm:
        # Single batch tile sized to B.  Prefer a 16-row multiple (bf16 MXU
        # feed packs 16 rows/vreg) but don't introduce a pad pass just for it:
        # x lives in HBM as f32 (8-sublane native), so an exact 8-multiple tile
        # is legal and pad-free.
        tm_eff = _round_up(B, 8)
        if tm_eff != B and tm_eff % 16 != 0:
            tm_eff = _round_up(B, 16)  # padding anyway -> round to 16
        n_tiles = 1
    else:
        n_tiles = -(-B // tm)
        tm_eff = _round_up(-(-B // n_tiles), 16)  # balanced tiles, mult. of 16
    B_pad = tm_eff * n_tiles
    if B_pad != B:
        x2 = jnp.pad(x2, ((0, B_pad - B), (0, 0)))

    # ---- hidden-dim chunking for the decode (single batch tile) case -------
    # Splits the weight stream across both megacore TCs and overlaps w1 DMA
    # with compute.  Disabled for multi-tile batches so the weights stay
    # VMEM-resident (constant index_map) across batch tiles.
    n_chunks = 2 if n_tiles == 1 else 1
    hk = HIDDEN // n_chunks

    w1_b, b1_2d = params["w1"], params["b1"]
    w2_b, b2_2d = params["w2"], params["b2"]

    flops = 2 * B_pad * HIDDEN * (HIDDEN + OUT_PAD)
    bytes_accessed = (
        B_pad * HIDDEN * 4 + w1_b.size * 2 + w2_b.size * 2
        + b1_2d.size * 4 + b2_2d.size * 4
        + n_chunks * B_pad * OUT_PAD * jnp.dtype(out_dtype).itemsize)

    out_slabs = pl.pallas_call(
        _decode_multicat_kernel,
        out_shape=jax.ShapeDtypeStruct((n_chunks, B_pad, OUT_PAD), out_dtype),
        grid=(n_tiles, n_chunks),
        in_specs=[
            pl.BlockSpec((tm_eff, HIDDEN), lambda i, c: (i, 0)),  # x: batch-tiled
            pl.BlockSpec((HIDDEN, hk), lambda i, c: (0, c)),      # w1: col chunk
            pl.BlockSpec((1, hk), lambda i, c: (0, c)),           # b1: col chunk
            pl.BlockSpec((hk, OUT_PAD), lambda i, c: (c, 0)),     # w2: row chunk
            pl.BlockSpec((1, OUT_PAD), lambda i, c: (0, 0)),      # b2: resident
        ],
        out_specs=pl.BlockSpec((None, tm_eff, OUT_PAD), lambda i, c: (c, i, 0)),
        compiler_params=pltpu.CompilerParams(
            dimension_semantics=("parallel", "parallel")),
        cost_estimate=pl.CostEstimate(
            flops=flops, transcendentals=0, bytes_accessed=bytes_accessed),
    )(x2, w1_b, b1_2d, w2_b, b2_2d)

    out = out_slabs[0] if n_chunks == 1 else jnp.sum(out_slabs, axis=0)
    out = out[:B, :NUM_CLASSES].astype(jnp.float32)
    return out.reshape(*lead, NUM_CLASSES)


# ----------------------------- references -----------------------------------
def _reference_f32(x, w1, b1, w2, b2):
    h = jnp.maximum(x @ w1 + b1, 0.0)
    return h @ w2 + b2


def _reference_bf16(x, w1, b1, w2, b2):
    # Mimics the kernel's bf16-operand / f32-accumulate arithmetic.
    h = jnp.dot(x.astype(jnp.bfloat16), w1.astype(jnp.bfloat16),
                preferred_element_type=jnp.float32)
    h = jnp.maximum(h + b1, 0.0)
    out = jnp.dot(h.astype(jnp.bfloat16), w2.astype(jnp.bfloat16),
                  preferred_element_type=jnp.float32)
    return out + b2


if __name__ == "__main__":
    key = jax.random.PRNGKey(0)
    k_x, k_w1, k_b1, k_w2, k_b2 = jax.random.split(key, 5)

    # Deterministic parameter init (mimics nn.Linear's uniform fan-in scaling).
    bound1 = 1.0 / (HIDDEN ** 0.5)
    w1 = jax.random.uniform(k_w1, (HIDDEN, HIDDEN), jnp.float32, -bound1, bound1)
    b1 = jax.random.uniform(k_b1, (HIDDEN,), jnp.float32, -bound1, bound1)
    w2 = jax.random.uniform(k_w2, (HIDDEN, NUM_CLASSES), jnp.float32, -bound1, bound1)
    b2 = jax.random.uniform(k_b2, (NUM_CLASSES,), jnp.float32, -bound1, bound1)

    # One-time weight prep (model-load time), reused across all calls.
    params = prepare_decode_multicat_params(w1, b1, w2, b2)
    fwd = jax.jit(decode_multicat)

    # B=8  -> decode path (single tile, hidden split across 2 chunks)
    # B=20 -> single tile with minimal batch padding (20 -> 32)
    # B=600-> multi-tile path (balanced 304-row tiles, weights resident)
    for B in (8, 20, 600):
        x = jax.random.normal(jax.random.fold_in(k_x, B), (B, HIDDEN),
                              dtype=jnp.float32)
        out = jax.block_until_ready(fwd(x, params))
        assert out.shape == (B, NUM_CLASSES), out.shape

        # Tight check vs a reference using the same bf16-operand arithmetic.
        ref_bf16 = _reference_bf16(x, w1, b1, w2, b2)
        assert jnp.allclose(out, ref_bf16, atol=2e-3, rtol=2e-3), \
            f"B={B}: mismatch vs bf16-arith reference"

        # Looser sanity check vs the pure-f32 module (bf16 rounding error).
        ref_f32 = _reference_f32(x, w1, b1, w2, b2)
        assert jnp.allclose(out, ref_f32, atol=5e-2, rtol=5e-2), \
            f"B={B}: mismatch vs f32 reference"

    print("KERNEL_OK")
</pallas_src>

<mosaic_0001>
module attributes {stable_mosaic.version = 11 : i64} {
  func.func @_decode_multicat_kernel(%arg0: i32, %arg1: i32, %arg2: memref<8x768xf32, #tpu.memory_space<vmem>>, %arg3: memref<768x384xbf16, #tpu.memory_space<vmem>>, %arg4: memref<1x384xf32, #tpu.memory_space<vmem>>, %arg5: memref<384x128xbf16, #tpu.memory_space<vmem>>, %arg6: memref<1x128xf32, #tpu.memory_space<vmem>>, %arg7: memref<1x8x128xf32, #tpu.memory_space<vmem>>) attributes {dimension_semantics = [#tpu.dimension_semantics<parallel>, #tpu.dimension_semantics<parallel>], iteration_bounds = array<i64: 1, 2>, scalar_prefetch = 0 : i64, scratch_operands = 0 : i64, tpu.core_type = #tpu.core_type<tc>, window_params = [{transform_indices = @transform_0, window_bounds = array<i64: 8, 768>}, {transform_indices = @transform_1, window_bounds = array<i64: 768, 384>}, {transform_indices = @transform_2, window_bounds = array<i64: 1, 384>}, {transform_indices = @transform_3, window_bounds = array<i64: 384, 128>}, {pipeline_mode = #tpu.pipeline_mode<synchronous>, transform_indices = @transform_4, window_bounds = array<i64: 1, 128>}, {transform_indices = @transform_5, window_bounds = array<i64: 1, 8, 128>}]} {
    %c0 = arith.constant 0 : index
    %c0_0 = arith.constant 0 : index
    %0 = vector.load %arg2[%c0, %c0_0] : memref<8x768xf32, #tpu.memory_space<vmem>>, vector<8x768xf32>
    %1 = arith.truncf %0 : vector<8x768xf32> to vector<8x768xbf16>
    %c0_1 = arith.constant 0 : index
    %c0_2 = arith.constant 0 : index
    %2 = vector.load %arg3[%c0_1, %c0_2] : memref<768x384xbf16, #tpu.memory_space<vmem>>, vector<768x384xbf16>
    %cst = arith.constant dense<0.000000e+00> : vector<8x384xf32>
    %3 = tpu.matmul %1, %2, %cst {dimension_numbers = #tpu.dot_dimension_numbers<[1], [0], [0], [1], [0, 0, 1, 1], [], []>} : vector<8x768xbf16>, vector<768x384xbf16>, vector<8x384xf32> -> vector<8x384xf32>
    %c0_3 = arith.constant 0 : index
    %c0_4 = arith.constant 0 : index
    %4 = vector.load %arg4[%c0_3, %c0_4] : memref<1x384xf32, #tpu.memory_space<vmem>>, vector<1x384xf32>
    %5 = vector.broadcast %4 : vector<1x384xf32> to vector<8x384xf32>
    %6 = arith.addf %3, %5 : vector<8x384xf32>
    %cst_5 = arith.constant 0.000000e+00 : f32
    %7 = vector.broadcast %cst_5 : f32 to vector<8x384xf32>
    %8 = arith.maximumf %6, %7 : vector<8x384xf32>
    %9 = arith.truncf %8 : vector<8x384xf32> to vector<8x384xbf16>
    %c0_6 = arith.constant 0 : index
    %c0_7 = arith.constant 0 : index
    %10 = vector.load %arg5[%c0_6, %c0_7] : memref<384x128xbf16, #tpu.memory_space<vmem>>, vector<384x128xbf16>
    %cst_8 = arith.constant dense<0.000000e+00> : vector<8x128xf32>
    %11 = tpu.matmul %9, %10, %cst_8 {dimension_numbers = #tpu.dot_dimension_numbers<[1], [0], [0], [1], [0, 0, 1, 1], [], []>} : vector<8x384xbf16>, vector<384x128xbf16>, vector<8x128xf32> -> vector<8x128xf32>
    %c0_i32 = arith.constant 0 : i32
    %12 = arith.cmpi eq, %arg1, %c0_i32 : i32
    %13 = arith.extui %12 : i1 to i32
    %14 = arith.sitofp %13 : i32 to f32
    %c0_9 = arith.constant 0 : index
    %c0_10 = arith.constant 0 : index
    %15 = vector.load %arg6[%c0_9, %c0_10] : memref<1x128xf32, #tpu.memory_space<vmem>>, vector<1x128xf32>
    %16 = vector.broadcast %14 : f32 to vector<1x128xf32>
    %17 = arith.mulf %16, %15 : vector<1x128xf32>
    %18 = vector.broadcast %17 : vector<1x128xf32> to vector<8x128xf32>
    %19 = arith.addf %11, %18 : vector<8x128xf32>
    %c0_11 = arith.constant 0 : index
    %c0_12 = arith.constant 0 : index
    %c0_13 = arith.constant 0 : index
    %20 = vector.load %arg7[%c0_11, %c0_12, %c0_13] : memref<1x8x128xf32, #tpu.memory_space<vmem>>, vector<1x8x128xf32>
    %21 = vector.shape_cast %20 : vector<1x8x128xf32> to vector<8x128xf32>
    %22 = vector.shape_cast %19 : vector<8x128xf32> to vector<1x8x128xf32>
    tpu.vector_store %arg7[%c0_11, %c0_12, %c0_13], %22 {strides = array<i32>} : memref<1x8x128xf32, #tpu.memory_space<vmem>>, vector<1x8x128xf32>,
    return
  }
  func.func @transform_0(%arg0: i32, %arg1: i32) -> (i32, i32) {
    %c0_i32 = arith.constant 0 : i32
    %c0_i32_0 = arith.constant 0 : i32
    return %arg0, %c0_i32 : i32, i32
  }
  func.func @transform_1(%arg0: i32, %arg1: i32) -> (i32, i32) {
    %c0_i32 = arith.constant 0 : i32
    %c0_i32_0 = arith.constant 0 : i32
    return %c0_i32, %arg1 : i32, i32
  }
  func.func @transform_2(%arg0: i32, %arg1: i32) -> (i32, i32) {
    %c0_i32 = arith.constant 0 : i32
    %c0_i32_0 = arith.constant 0 : i32
    return %c0_i32, %arg1 : i32, i32
  }
  func.func @transform_3(%arg0: i32, %arg1: i32) -> (i32, i32) {
    %c0_i32 = arith.constant 0 : i32
    %c0_i32_0 = arith.constant 0 : i32
    return %arg1, %c0_i32 : i32, i32
  }
  func.func @transform_4(%arg0: i32, %arg1: i32) -> (i32, i32) {
    %c0_i32 = arith.constant 0 : i32
    %c0_i32_0 = arith.constant 0 : i32
    %c0_i32_1 = arith.constant 0 : i32
    return %c0_i32, %c0_i32_0 : i32, i32
  }
  func.func @transform_5(%arg0: i32, %arg1: i32) -> (i32, i32, i32) {
    %c0_i32 = arith.constant 0 : i32
    %c0_i32_0 = arith.constant 0 : i32
    return %arg1, %arg0, %c0_i32 : i32, i32, i32
  }
}

</mosaic_0001>

<llo_original>
// kernel: decode_multicat.1
$region0: #{decode_multicat.1}
  #allocation0 [shape = 'u32[]', space=smem, size = 0x4, offset = 0x4, fixed_abs, tag = 'smem constant byte address 0x4 - core index']
  #allocation1 [shape = 'u32[144,128]{1,0:T(1,128)}', space=vmem, size = 0x12000, scoped, tag = 'internal scratch']
  %s0 = inlined_call_operand.hbm [shape: f32[8,768], index: 0, kind: input, shape index: {}]
  %s1 = inlined_call_operand.hbm [shape: bf16[768,768], index: 1, kind: input, shape index: {}]
  %s2 = inlined_call_operand.hbm [shape: f32[1,768], index: 2, kind: input, shape index: {}]
  %s3 = inlined_call_operand.hbm [shape: bf16[768,128], index: 3, kind: input, shape index: {}]
  %s4 = inlined_call_operand.hbm [shape: f32[1,128], index: 4, kind: input, shape index: {}]
  %s5 = inlined_call_operand.vmem [shape: f32[2,8,128], index: 5, kind: output, shape index: {}]
  %s6 = sld [smem:[#allocation0]]
  $region73: #{decode_multicat.1} parent=0
    _
  %s8 = ssub.s32 1, %s6
  %s9 = scalar_select 0, %s8, %s6
  $region1: #{decode_multicat.1} parent=0
    #allocation2 [shape = 'u8[24576]{0}', space=vmem, size = 0x6000, scoped, tag = 'input window, operand 0, single buffered']
    #allocation3 [shape = 's32[2]{0}', space=sflag, size = 0x8, scoped, tag = 'scoped memory for decode_multicat.1']
    #allocation4 [shape = 'u8[1179648]{0}', space=vmem, size = 0x120000, scoped, tag = 'input window, operand 1']
    #allocation5 [shape = 's32[2]{0}', space=sflag, size = 0x8, scoped, tag = 'scoped memory for decode_multicat.1']
    #allocation6 [shape = 'u8[3072]{0}', space=vmem, size = 0xc00, scoped, tag = 'input window, operand 2']
    #allocation7 [shape = 'u8[196608]{0}', space=vmem, size = 0x30000, scoped, tag = 'input window, operand 3']
    #allocation8 [shape = 's32[2]{0}', space=sflag, size = 0x8, scoped, tag = 'scoped memory for decode_multicat.1']
    #allocation9 [shape = 'u8[512]{0}', space=vmem, size = 0x400, scoped, tag = 'input window, operand 4, single buffered']
    %10 = vsyncpa [#allocation3], 0
    %11 = vsyncpa [#allocation5], 0
    %s12 = scalar_lea.sflag [#allocation5], 1
    %13 = vsyncpa %s12, 0
    %14 = vsyncpa [#allocation8], 0
    %s15 = scalar_lea.sflag [#allocation8], 1
    %16 = vsyncpa %s15, 0
    loop: start=0, step=1, limit=4
    $region2: #{decode_multicat.1} parent=1 // loop_pre_header
      _
    $region3: #{decode_multicat.1} parent=1 // loop_header
      %s18 = sphi 0, %s22
      %p19 = scmp.ge.s32.totalorder %s18, 4
      %s25 = sphi 0, %s37
      %s26 = sphi 0, %s33
      %s27 = sphi 0, %s25
      %s28 = sphi 0, %s26
      %s29 = sphi 0, %s27
      %s30 = sphi 0, %s28
      %s40 = sphi 0, %s42
      %s43 = sphi 0, %s40
      %s44 = sphi 0, %s43
      %s60 = sphi 0, %s44
      %s66 = sphi 0, %s68
      %s69 = sphi 0, %s66
      %s70 = sphi 0, %s69
      %s86 = sphi 0, %s70
      %s92 = sphi 0, %s94
      %s95 = sphi 0, %s92
      %s96 = sphi 0, %s95
      %s112 = sphi 0, %s96
      %s118 = sphi 0, %s120
      %s121 = sphi 0, %s118
      %s122 = sphi 0, %s121
      %s138 = sphi 0, %s122
      %s142 = sphi 0, %s142
      %s144 = sphi 0, %s142
      %s145 = sphi 0, %s144
      %s159 = sphi 0, %s145
      %s167 = sphi 0, %s169
      %s170 = sphi 0, %s167
      %s171 = sphi 0, %s170
      %s187 = sphi 0, %s171
    $region4: #{decode_multicat.1} parent=1 // loop_header_branch
      %21 = sbr.rel (%p19) target = $region8
    $region5: #{decode_multicat.1} parent=1 // loop_body
      %s23 = ssub.s32 %s18, 1
      %s24 = ssub.s32 %s18, 2
      %s31 = sadd.s32 1, %s26
      %p32 = scmp.ge.s32.totalorder %s31, 2
      %s33 = scalar_select %p32, 0, %s31
      %s34 = sadd.s32 1, %s25
      %s35 = scalar_select %p32, %s34, %s25
      %p36 = scmp.ge.s32.totalorder %s35, 1
      %s37 = scalar_select %p36, 0, %s35
      %s38 = ssub.s32 %s25, %s37
      %p39 = scmp.eq.s32.totalorder %s38, 0
      %s41 = sadd.s32 %s40, 1
      %s42 = scalar_select %p39, %s40, %s41
      %p45 = pneg %p39
      %p46 = scmp.eq.s32.totalorder %s18, 1
      %p47 = por %p45, %p46
      %p48 = scmp.ne.s32.totalorder %s40, %s43
      %p49 = scmp.eq.s32.totalorder %s18, 0
      %p50 = por %p48, %p49
      %p51 = scmp.ne.s32.totalorder %s40, %s43
      %p52 = scmp.eq.s32.totalorder %s23, 1
      %p53 = por %p51, %p52
      %p54 = scmp.ne.s32.totalorder %s43, %s44
      %p55 = scmp.eq.s32.totalorder %s23, 0
      %p56 = por %p54, %p55
      %p57 = scmp.ne.s32.totalorder %s43, %s44
      %p58 = scmp.eq.s32.totalorder %s24, 1
      %p59 = por %p57, %p58
      %p61 = scmp.ne.s32.totalorder %s44, %s60
      %p62 = scmp.eq.s32.totalorder %s24, 0
      %p63 = por %p61, %p62
      %s64 = ssub.s32 %s26, %s33
      %p65 = scmp.eq.s32.totalorder %s64, 0
      %s67 = sadd.s32 %s66, 1
      %s68 = scalar_select %p65, %s66, %s67
      %p71 = pneg %p65
      %p72 = scmp.eq.s32.totalorder %s18, 1
      %p73 = por %p71, %p72
      %p74 = scmp.ne.s32.totalorder %s66, %s69
      %p75 = scmp.eq.s32.totalorder %s18, 0
      %p76 = por %p74, %p75
      %p77 = scmp.ne.s32.totalorder %s66, %s69
      %p78 = scmp.eq.s32.totalorder %s23, 1
      %p79 = por %p77, %p78
      %p80 = scmp.ne.s32.totalorder %s69, %s70
      %p81 = scmp.eq.s32.totalorder %s23, 0
      %p82 = por %p80, %p81
      %p83 = scmp.ne.s32.totalorder %s69, %s70
      %p84 = scmp.eq.s32.totalorder %s24, 1
      %p85 = por %p83, %p84
      %p87 = scmp.ne.s32.totalorder %s70, %s86
      %p88 = scmp.eq.s32.totalorder %s24, 0
      %p89 = por %p87, %p88
      %s90 = ssub.s32 %s26, %s33
      %p91 = scmp.eq.s32.totalorder %s90, 0
      %s93 = sadd.s32 %s92, 1
      %s94 = scalar_select %p91, %s92, %s93
      %p97 = pneg %p91
      %p98 = scmp.eq.s32.totalorder %s18, 1
      %p99 = por %p97, %p98
      %p100 = scmp.ne.s32.totalorder %s92, %s95
      %p101 = scmp.eq.s32.totalorder %s18, 0
      %p102 = por %p100, %p101
      %p103 = scmp.ne.s32.totalorder %s92, %s95
      %p104 = scmp.eq.s32.totalorder %s23, 1
      %p105 = por %p103, %p104
      %p106 = scmp.ne.s32.totalorder %s95, %s96
      %p107 = scmp.eq.s32.totalorder %s23, 0
      %p108 = por %p106, %p107
      %p109 = scmp.ne.s32.totalorder %s95, %s96
      %p110 = scmp.eq.s32.totalorder %s24, 1
      %p111 = por %p109, %p110
      %p113 = scmp.ne.s32.totalorder %s96, %s112
      %p114 = scmp.eq.s32.totalorder %s24, 0
      %p115 = por %p113, %p114
      %s116 = ssub.s32 %s26, %s33
      %p117 = scmp.eq.s32.totalorder %s116, 0
      %s119 = sadd.s32 %s118, 1
      %s120 = scalar_select %p117, %s118, %s119
      %p123 = pneg %p117
      %p124 = scmp.eq.s32.totalorder %s18, 1
      %p125 = por %p123, %p124
      %p126 = scmp.ne.s32.totalorder %s118, %s121
      %p127 = scmp.eq.s32.totalorder %s18, 0
      %p128 = por %p126, %p127
      %p129 = scmp.ne.s32.totalorder %s118, %s121
      %p130 = scmp.eq.s32.totalorder %s23, 1
      %p131 = por %p129, %p130
      %p132 = scmp.ne.s32.totalorder %s121, %s122
      %p133 = scmp.eq.s32.totalorder %s23, 0
      %p134 = por %p132, %p133
      %p135 = scmp.ne.s32.totalorder %s121, %s122
      %p136 = scmp.eq.s32.totalorder %s24, 1
      %p137 = por %p135, %p136
      %p139 = scmp.ne.s32.totalorder %s122, %s138
      %p140 = scmp.eq.s32.totalorder %s24, 0
      %p141 = por %p139, %p140
      %s143 = sadd.s32 %s142, 1
      %p146 = scmp.eq.s32.totalorder %s18, 1
      %p147 = scmp.ne.s32.totalorder %s142, %s144
      %p148 = scmp.eq.s32.totalorder %s18, 0
      %p149 = por %p147, %p148
      %p150 = scmp.ne.s32.totalorder %s142, %s144
      %p151 = scmp.eq.s32.totalorder %s23, 1
      %p152 = por %p150, %p151
      %p153 = scmp.ne.s32.totalorder %s144, %s145
      %p154 = scmp.eq.s32.totalorder %s23, 0
      %p155 = por %p153, %p154
      %p156 = scmp.ne.s32.totalorder %s144, %s145
      %p157 = scmp.eq.s32.totalorder %s24, 1
      %p158 = por %p156, %p157
      %p160 = scmp.ne.s32.totalorder %s145, %s159
      %p161 = scmp.eq.s32.totalorder %s24, 0
      %p162 = por %p160, %p161
      %s163 = ssub.s32 %s26, %s33
      %s164 = ssub.s32 %s25, %s37
      %s165 = sor.u32 %s163, %s164
      %p166 = scmp.eq.s32.totalorder %s165, 0
      %s168 = sadd.s32 %s167, 1
      %s169 = scalar_select %p166, %s167, %s168
      %p172 = pneg %p166
      %p173 = scmp.eq.s32.totalorder %s18, 1
      %p174 = por %p172, %p173
      %p175 = scmp.ne.s32.totalorder %s167, %s170
      %p176 = scmp.eq.s32.totalorder %s18, 0
      %p177 = por %p175, %p176
      %p178 = scmp.ne.s32.totalorder %s167, %s170
      %p179 = scmp.eq.s32.totalorder %s23, 1
      %p180 = por %p178, %p179
      %p181 = scmp.ne.s32.totalorder %s170, %s171
      %p182 = scmp.eq.s32.totalorder %s23, 0
      %p183 = por %p181, %p182
      %p184 = scmp.ne.s32.totalorder %s170, %s171
      %p185 = scmp.eq.s32.totalorder %s24, 1
      %p186 = por %p184, %p185
      %p188 = scmp.ne.s32.totalorder %s171, %s187
      %p189 = scmp.eq.s32.totalorder %s24, 0
      %p190 = por %p188, %p189
      %p191 = scmp.le.s32.totalorder 1, %s18
      %p192 = scmp.lt.s32.totalorder %s18, 3
      %p193 = pnand %p191, %p192
      %p194 = pneg %p193
      // Predicated region
      $region9: #{decode_multicat.1} parent=5 // pred_check
        _
      $region10: #{decode_multicat.1} parent=5 // pred_check_branch
        %196 = sbr.rel (%p193) target = $region12
      $region11: #{decode_multicat.1} parent=5 // pred_region
        %s197 = ssub.s32 %s18, 1
        // Predicated region
        $region13: #{decode_multicat.1} parent=11 // pred_check
          %p198 = pneg %p56
        $region14: #{decode_multicat.1} parent=11 // pred_check_branch
          %200 = sbr.rel (%p198) target = $region16
        $region15: #{decode_multicat.1} parent=11 // pred_region
          %s202 = ssub.s32 768, 768
          %203 = vsyncadd [#allocation3], %s202
          %s204 = smul.addr %s27, 6
          %s205 = smul.addr %s204, 128
          %s206 = scalar_lea.hbm %s0, %s205
          %s208 = sshll.u32 [#allocation2], 4
          %s209 = int_to_ptr.vmem [resolvable:$true] %s208
          %211 = dma.hbm_to_vmem [thread:$0]  %s206, 768, %s209, [#allocation3]
        $region16: #{decode_multicat.1} parent=11 // pred_fallthru
          _
        // Predicated region
        $region17: #{decode_multicat.1} parent=11 // pred_check
          %p212 = pneg %p155
        $region18: #{decode_multicat.1} parent=11 // pred_check_branch
          %214 = sbr.rel (%p212) target = $region20
        $region19: #{decode_multicat.1} parent=11 // pred_region
          %s216 = ssub.s32 16, 16
          %217 = vsyncadd [#allocation8], %s216
          %s219 = sshll.u32 [#allocation9], 4
          %s220 = int_to_ptr.vmem [resolvable:$true] %s219
          %222 = dma.hbm_to_vmem [thread:$0]  %s4, 16, %s220, [#allocation8]
        $region20: #{decode_multicat.1} parent=11 // pred_fallthru
          _
      $region12: #{decode_multicat.1} parent=5 // pred_fallthru
        _
      %p223 = scmp.lt.s32.totalorder %s18, 2
      // Predicated region
      $region21: #{decode_multicat.1} parent=5 // pred_check
        %p224 = pneg %p223
      $region22: #{decode_multicat.1} parent=5 // pred_check_branch
        %226 = sbr.rel (%p224) target = $region24
      $region23: #{decode_multicat.1} parent=5 // pred_region
        // Predicated region
        $region25: #{decode_multicat.1} parent=23 // pred_check
          %p227 = pneg %p76
        $region26: #{decode_multicat.1} parent=23 // pred_check_branch
          %229 = sbr.rel (%p227) target = $region28
        $region27: #{decode_multicat.1} parent=23 // pred_region
          %s230 = sand.u32 %s18, 1
          %s231 = scalar_lea.sflag [#allocation5], %s230
          %s232 = sand.u32 %s66, 1
          %s233 = smul.addr %s232, 1152
          %s234 = scalar_lea.vmem [#allocation4], %s233
          %s235 = smul.u32 3, %s26
          %s237 = ssub.s32 18432, 18432
          %238 = vsyncadd %s231, %s237
          %s239 = smul.addr %s235, 64
          %s240 = scalar_lea.hbm %s1, %s239
          %s241 = sshll.u32 %s234, 4
          %s242 = int_to_ptr.vmem [resolvable:$true] %s241
          %247 = dma.hbm_to_vmem [thread:$0]  %s240, 18432, %s242, %s231, 384, 192, 12
        $region28: #{decode_multicat.1} parent=23 // pred_fallthru
          _
        // Predicated region
        $region29: #{decode_multicat.1} parent=23 // pred_check
          %p248 = pneg %p102
        $region30: #{decode_multicat.1} parent=23 // pred_check_branch
          %250 = sbr.rel (%p248) target = $region32
        $region31: #{decode_multicat.1} parent=23 // pred_region
          %s251 = sand.u32 %s18, 1
          %s252 = scalar_lea.sflag [#allocation5], %s251
          %s253 = sand.u32 %s92, 1
          %s254 = smul.addr %s253, 3
          %s255 = scalar_lea.vmem [#allocation6], %s254
          %s256 = smul.u32 3, %s26
          %s258 = ssub.s32 48, 48
          %259 = vsyncadd %s252, %s258
          %s260 = smul.addr %s256, 16
          %s261 = scalar_lea.hbm %s2, %s260
          %s263 = sshll.u32 %s255, 4
          %s264 = int_to_ptr.vmem [resolvable:$true] %s263
          %266 = dma.hbm_to_vmem [thread:$0]  %s261, 48, %s264, %s252
        $region32: #{decode_multicat.1} parent=23 // pred_fallthru
          _
        // Predicated region
        $region33: #{decode_multicat.1} parent=23 // pred_check
          %p267 = pneg %p128
        $region34: #{decode_multicat.1} parent=23 // pred_check_branch
          %269 = sbr.rel (%p267) target = $region36
        $region35: #{decode_multicat.1} parent=23 // pred_region
          %s270 = sand.u32 %s18, 1
          %s271 = scalar_lea.sflag [#allocation8], %s270
          %s272 = sand.u32 %s118, 1
          %s273 = smul.addr %s272, 192
          %s274 = scalar_lea.vmem [#allocation7], %s273
          %s275 = smul.u32 48, %s26
          %s277 = ssub.s32 3072, 3072
          %278 = vsyncadd %s271, %s277
          %s279 = smul.addr %s275, 64
          %s280 = scalar_lea.hbm %s3, %s279
          %s281 = sshll.u32 %s274, 4
          %s282 = int_to_ptr.vmem [resolvable:$true] %s281
          %287 = dma.hbm_to_vmem [thread:$0]  %s280, 3072, %s282, %s271, 64, 64, 4
        $region36: #{decode_multicat.1} parent=23 // pred_fallthru
          _
      $region24: #{decode_multicat.1} parent=5 // pred_fallthru
        _
      %p288 = scmp.le.s32.totalorder 1, %s18
      %p289 = scmp.lt.s32.totalorder %s18, 3
      %p290 = pnand %p288, %p289
      %p291 = pneg %p290
      // Predicated region
      $region37: #{decode_multicat.1} parent=5 // pred_check
        _
      $region38: #{decode_multicat.1} parent=5 // pred_check_branch
        %293 = sbr.rel (%p290) target = $region40
      $region39: #{decode_multicat.1} parent=5 // pred_region
        %s294 = ssub.s32 %s18, 1
        // Predicated region
        $region41: #{decode_multicat.1} parent=39 // pred_check
          %p295 = pneg %p56
        $region42: #{decode_multicat.1} parent=39 // pred_check_branch
          %297 = sbr.rel (%p295) target = $region44
        $region43: #{decode_multicat.1} parent=39 // pred_region
          %298 = dma.done [#allocation3], 768
        $region44: #{decode_multicat.1} parent=39 // pred_fallthru
          _
        %s299 = sand.u32 %s23, 1
        %s300 = scalar_lea.sflag [#allocation5], %s299
        %s301 = sand.u32 %s69, 1
        %s302 = smul.addr %s301, 1152
        %s303 = scalar_lea.vmem [#allocation4], %s302
        // Predicated region
        $region45: #{decode_multicat.1} parent=39 // pred_check
          %p304 = pneg %p82
        $region46: #{decode_multicat.1} parent=39 // pred_check_branch
          %306 = sbr.rel (%p304) target = $region48
        $region47: #{decode_multicat.1} parent=39 // pred_region
          %307 = dma.done %s300, 18432
        $region48: #{decode_multicat.1} parent=39 // pred_fallthru
          _
        %s308 = sand.u32 %s23, 1
        %s309 = scalar_lea.sflag [#allocation5], %s308
        %s310 = sand.u32 %s95, 1
        %s311 = smul.addr %s310, 3
        %s312 = scalar_lea.vmem [#allocation6], %s311
        // Predicated region
        $region49: #{decode_multicat.1} parent=39 // pred_check
          %p313 = pneg %p108
        $region50: #{decode_multicat.1} parent=39 // pred_check_branch
          %315 = sbr.rel (%p313) target = $region52
        $region51: #{decode_multicat.1} parent=39 // pred_region
          %316 = dma.done %s309, 48
        $region52: #{decode_multicat.1} parent=39 // pred_fallthru
          _
        %s317 = sand.u32 %s23, 1
        %s318 = scalar_lea.sflag [#allocation8], %s317
        %s319 = sand.u32 %s121, 1
        %s320 = smul.addr %s319, 192
        %s321 = scalar_lea.vmem [#allocation7], %s320
        // Predicated region
        $region53: #{decode_multicat.1} parent=39 // pred_check
          %p322 = pneg %p134
        $region54: #{decode_multicat.1} parent=39 // pred_check_branch
          %324 = sbr.rel (%p322) target = $region56
        $region55: #{decode_multicat.1} parent=39 // pred_region
          %325 = dma.done %s318, 3072
        $region56: #{decode_multicat.1} parent=39 // pred_fallthru
          _
        // Predicated region
        $region57: #{decode_multicat.1} parent=39 // pred_check
          %p326 = pneg %p155
        $region58: #{decode_multicat.1} parent=39 // pred_check_branch
          %328 = sbr.rel (%p326) target = $region60
        $region59: #{decode_multicat.1} parent=39 // pred_region
          %329 = dma.done [#allocation8], 16
        $region60: #{decode_multicat.1} parent=39 // pred_fallthru
          _
        %p330 = pneg %p56
        %p331 = pneg %p53
        %s332 = sand.u32 %s23, 1
        %s333 = scalar_lea.sflag [#allocation5], %s332
        %s334 = sand.u32 %s69, 1
        %s335 = smul.addr %s334, 1152
        %s336 = scalar_lea.vmem [#allocation4], %s335
        %p337 = pneg %p82
        %p338 = pneg %p79
        %s339 = sand.u32 %s23, 1
        %s340 = scalar_lea.sflag [#allocation5], %s339
        %s341 = sand.u32 %s95, 1
        %s342 = smul.addr %s341, 3
        %s343 = scalar_lea.vmem [#allocation6], %s342
        %p344 = pneg %p108
        %p345 = pneg %p105
        %s346 = sand.u32 %s23, 1
        %s347 = scalar_lea.sflag [#allocation8], %s346
        %s348 = sand.u32 %s121, 1
        %s349 = smul.addr %s348, 192
        %s350 = scalar_lea.vmem [#allocation7], %s349
        %p351 = pneg %p134
        %p352 = pneg %p131
        %p353 = pneg %p155
        %p354 = pneg %p152
        %p355 = pneg %p183
        %p356 = pneg %p180
        %p357 = scmp.lt.s32.totalorder %s28, 1
        %s358 = scalar_select %p357, %s28, 1
        %p359 = scmp.lt.s32.totalorder %s27, 0
        %s360 = scalar_select %p359, %s27, 0
        %s361 = sadd.s32 %s360, %s358
        %s362 = smul.addr %s361, 8
        %s363 = scalar_lea.vmem %s5, %s362
        %s364 = smul.u32 3, %s28
        %s365 = smul.u32 3, %s28
        %s366 = smul.u32 48, %s28
        %p367 = scmp.lt.s32.totalorder %s28, 1
        %s368 = scalar_select %p367, %s28, 1
        %p369 = scmp.lt.s32.totalorder %s27, 0
        %s370 = scalar_select %p369, %s27, 0
        %s371 = sadd.s32 %s370, %s368
        %s372 = smul.addr %s371, 8
        %s373 = scalar_lea.vmem %s5, %s372
        %v375 = vld [vmem:[#allocation2] sm:$0xff]
        %v376 = vld [vmem:[#allocation2 + $0x8] sm:$0xff]
        %v377 = vld [vmem:[#allocation2 + $0x10] sm:$0xff]
        %v378 = vld [vmem:[#allocation2 + $0x18] sm:$0xff]
        %v379 = vld [vmem:[#allocation2 + $0x20] sm:$0xff]
        %v380 = vld [vmem:[#allocation2 + $0x28] sm:$0xff]
        %v381 = vpack.c.bf16 %v375, %v375
        %v382 = vpack.c.bf16 %v376, %v376
        %v383 = vpack.c.bf16 %v377, %v377
        %v384 = vpack.c.bf16 %v378, %v378
        %v385 = vpack.c.bf16 %v379, %v379
        %v386 = vpack.c.bf16 %v380, %v380
        %v387 = vld [vmem:[%s303] sm:$0xff]
        %v388 = vld [vmem:[%s303 + $0x8] sm:$0xf]
        %v389 = vld [vmem:[%s303 + $0xc] sm:$0xff]
        %v390 = vld [vmem:[%s303 + $0x14] sm:$0xf]
        %v391 = vld [vmem:[%s303 + $0x18] sm:$0xff]
        %v392 = vld [vmem:[%s303 + $0x20] sm:$0xf]
        %v393 = vld [vmem:[%s303 + $0x24] sm:$0xff]
        %v394 = vld [vmem:[%s303 + $0x2c] sm:$0xf]
        %v395 = vld [vmem:[%s303 + $0x30] sm:$0xff]
        %v396 = vld [vmem:[%s303 + $0x38] sm:$0xf]
        %v397 = vld [vmem:[%s303 + $0x3c] sm:$0xff]
        %v398 = vld [vmem:[%s303 + $0x44] sm:$0xf]
        %v399 = vld [vmem:[%s303 + $0x48] sm:$0xff]
        %v400 = vld [vmem:[%s303 + $0x50] sm:$0xf]
        %v401 = vld [vmem:[%s303 + $0x54] sm:$0xff]
        %v402 = vld [vmem:[%s303 + $0x5c] sm:$0xf]
        %v403 = vld [vmem:[%s303 + $0x60] sm:$0xff]
        %v404 = vld [vmem:[%s303 + $0x68] sm:$0xf]
        %v405 = vld [vmem:[%s303 + $0x6c] sm:$0xff]
        %v406 = vld [vmem:[%s303 + $0x74] sm:$0xf]
        %v407 = vld [vmem:[%s303 + $0x78] sm:$0xff]
        %v408 = vld [vmem:[%s303 + $0x80] sm:$0xf]
        %v409 = vld [vmem:[%s303 + $0x84] sm:$0xff]
        %v410 = vld [vmem:[%s303 + $0x8c] sm:$0xf]
        %v411 = vld [vmem:[%s303 + $0x90] sm:$0xff]
        %v412 = vld [vmem:[%s303 + $0x98] sm:$0xf]
        %v413 = vld [vmem:[%s303 + $0x9c] sm:$0xff]
        %v414 = vld [vmem:[%s303 + $0xa4] sm:$0xf]
        %v415 = vld [vmem:[%s303 + $0xa8] sm:$0xff]
        %v416 = vld [vmem:[%s303 + $0xb0] sm:$0xf]
        %v417 = vld [vmem:[%s303 + $0xb4] sm:$0xff]
        %v418 = vld [vmem:[%s303 + $0xbc] sm:$0xf]
        %v419 = vld [vmem:[%s303 + $0xc0] sm:$0xff]
        %v420 = vld [vmem:[%s303 + $0xc8] sm:$0xf]
        %v421 = vld [vmem:[%s303 + $0xcc] sm:$0xff]
        %v422 = vld [vmem:[%s303 + $0xd4] sm:$0xf]
        %v423 = vld [vmem:[%s303 + $0xd8] sm:$0xff]
        %v424 = vld [vmem:[%s303 + $0xe0] sm:$0xf]
        %v425 = vld [vmem:[%s303 + $0xe4] sm:$0xff]
        %v426 = vld [vmem:[%s303 + $0xec] sm:$0xf]
        %v427 = vld [vmem:[%s303 + $0xf0] sm:$0xff]
        %v428 = vld [vmem:[%s303 + $0xf8] sm:$0xf]
        %v429 = vld [vmem:[%s303 + $0xfc] sm:$0xff]
        %v430 = vld [vmem:[%s303 + $0x104] sm:$0xf]
        %v431 = vld [vmem:[%s303 + $0x108] sm:$0xff]
        %v432 = vld [vmem:[%s303 + $0x110] sm:$0xf]
        %v433 = vld [vmem:[%s303 + $0x114] sm:$0xff]
        %v434 = vld [vmem:[%s303 + $0x11c] sm:$0xf]
        %v435 = vld [vmem:[%s303 + $0x120] sm:$0xff]
        %v436 = vld [vmem:[%s303 + $0x128] sm:$0xf]
        %v437 = vld [vmem:[%s303 + $0x12c] sm:$0xff]
        %v438 = vld [vmem:[%s303 + $0x134] sm:$0xf]
        %v439 = vld [vmem:[%s303 + $0x138] sm:$0xff]
        %v440 = vld [vmem:[%s303 + $0x140] sm:$0xf]
        %v441 = vld [vmem:[%s303 + $0x144] sm:$0xff]
        %v442 = vld [vmem:[%s303 + $0x14c] sm:$0xf]
        %v443 = vld [vmem:[%s303 + $0x150] sm:$0xff]
        %v444 = vld [vmem:[%s303 + $0x158] sm:$0xf]
        %v445 = vld [vmem:[%s303 + $0x15c] sm:$0xff]
        %v446 = vld [vmem:[%s303 + $0x164] sm:$0xf]
        %v447 = vld [vmem:[%s303 + $0x168] sm:$0xff]
        %v448 = vld [vmem:[%s303 + $0x170] sm:$0xf]
        %v449 = vld [vmem:[%s303 + $0x174] sm:$0xff]
        %v450 = vld [vmem:[%s303 + $0x17c] sm:$0xf]
        %v451 = vld [vmem:[%s303 + $0x180] sm:$0xff]
        %v452 = vld [vmem:[%s303 + $0x188] sm:$0xf]
        %v453 = vld [vmem:[%s303 + $0x18c] sm:$0xff]
        %v454 = vld [vmem:[%s303 + $0x194] sm:$0xf]
        %v455 = vld [vmem:[%s303 + $0x198] sm:$0xff]
        %v456 = vld [vmem:[%s303 + $0x1a0] sm:$0xf]
        %v457 = vld [vmem:[%s303 + $0x1a4] sm:$0xff]
        %v458 = vld [vmem:[%s303 + $0x1ac] sm:$0xf]
        %v459 = vld [vmem:[%s303 + $0x1b0] sm:$0xff]
        %v460 = vld [vmem:[%s303 + $0x1b8] sm:$0xf]
        %v461 = vld [vmem:[%s303 + $0x1bc] sm:$0xff]
        %v462 = vld [vmem:[%s303 + $0x1c4] sm:$0xf]
        %v463 = vld [vmem:[%s303 + $0x1c8] sm:$0xff]
        %v464 = vld [vmem:[%s303 + $0x1d0] sm:$0xf]
        %v465 = vld [vmem:[%s303 + $0x1d4] sm:$0xff]
        %v466 = vld [vmem:[%s303 + $0x1dc] sm:$0xf]
        %v467 = vld [vmem:[%s303 + $0x1e0] sm:$0xff]
        %v468 = vld [vmem:[%s303 + $0x1e8] sm:$0xf]
        %v469 = vld [vmem:[%s303 + $0x1ec] sm:$0xff]
        %v470 = vld [vmem:[%s303 + $0x1f4] sm:$0xf]
        %v471 = vld [vmem:[%s303 + $0x1f8] sm:$0xff]
        %v472 = vld [vmem:[%s303 + $0x200] sm:$0xf]
        %v473 = vld [vmem:[%s303 + $0x204] sm:$0xff]
        %v474 = vld [vmem:[%s303 + $0x20c] sm:$0xf]
        %v475 = vld [vmem:[%s303 + $0x210] sm:$0xff]
        %v476 = vld [vmem:[%s303 + $0x218] sm:$0xf]
        %v477 = vld [vmem:[%s303 + $0x21c] sm:$0xff]
        %v478 = vld [vmem:[%s303 + $0x224] sm:$0xf]
        %v479 = vld [vmem:[%s303 + $0x228] sm:$0xff]
        %v480 = vld [vmem:[%s303 + $0x230] sm:$0xf]
        %v481 = vld [vmem:[%s303 + $0x234] sm:$0xff]
        %v482 = vld [vmem:[%s303 + $0x23c] sm:$0xf]
        %v483 = vld [vmem:[%s303 + $0x240] sm:$0xff]
        %v484 = vld [vmem:[%s303 + $0x248] sm:$0xf]
        %v485 = vld [vmem:[%s303 + $0x24c] sm:$0xff]
        %v486 = vld [vmem:[%s303 + $0x254] sm:$0xf]
        %v487 = vld [vmem:[%s303 + $0x258] sm:$0xff]
        %v488 = vld [vmem:[%s303 + $0x260] sm:$0xf]
        %v489 = vld [vmem:[%s303 + $0x264] sm:$0xff]
        %v490 = vld [vmem:[%s303 + $0x26c] sm:$0xf]
        %v491 = vld [vmem:[%s303 + $0x270] sm:$0xff]
        %v492 = vld [vmem:[%s303 + $0x278] sm:$0xf]
        %v493 = vld [vmem:[%s303 + $0x27c] sm:$0xff]
        %v494 = vld [vmem:[%s303 + $0x284] sm:$0xf]
        %v495 = vld [vmem:[%s303 + $0x288] sm:$0xff]
        %v496 = vld [vmem:[%s303 + $0x290] sm:$0xf]
        %v497 = vld [vmem:[%s303 + $0x294] sm:$0xff]
        %v498 = vld [vmem:[%s303 + $0x29c] sm:$0xf]
        %v499 = vld [vmem:[%s303 + $0x2a0] sm:$0xff]
        %v500 = vld [vmem:[%s303 + $0x2a8] sm:$0xf]
        %v501 = vld [vmem:[%s303 + $0x2ac] sm:$0xff]
        %v502 = vld [vmem:[%s303 + $0x2b4] sm:$0xf]
        %v503 = vld [vmem:[%s303 + $0x2b8] sm:$0xff]
        %v504 = vld [vmem:[%s303 + $0x2c0] sm:$0xf]
        %v505 = vld [vmem:[%s303 + $0x2c4] sm:$0xff]
        %v506 = vld [vmem:[%s303 + $0x2cc] sm:$0xf]
        %v507 = vld [vmem:[%s303 + $0x2d0] sm:$0xff]
        %v508 = vld [vmem:[%s303 + $0x2d8] sm:$0xf]
        %v509 = vld [vmem:[%s303 + $0x2dc] sm:$0xff]
        %v510 = vld [vmem:[%s303 + $0x2e4] sm:$0xf]
        %v511 = vld [vmem:[%s303 + $0x2e8] sm:$0xff]
        %v512 = vld [vmem:[%s303 + $0x2f0] sm:$0xf]
        %v513 = vld [vmem:[%s303 + $0x2f4] sm:$0xff]
        %v514 = vld [vmem:[%s303 + $0x2fc] sm:$0xf]
        %v515 = vld [vmem:[%s303 + $0x300] sm:$0xff]
        %v516 = vld [vmem:[%s303 + $0x308] sm:$0xf]
        %v517 = vld [vmem:[%s303 + $0x30c] sm:$0xff]
        %v518 = vld [vmem:[%s303 + $0x314] sm:$0xf]
        %v519 = vld [vmem:[%s303 + $0x318] sm:$0xff]
        %v520 = vld [vmem:[%s303 + $0x320] sm:$0xf]
        %v521 = vld [vmem:[%s303 + $0x324] sm:$0xff]
        %v522 = vld [vmem:[%s303 + $0x32c] sm:$0xf]
        %v523 = vld [vmem:[%s303 + $0x330] sm:$0xff]
        %v524 = vld [vmem:[%s303 + $0x338] sm:$0xf]
        %v525 = vld [vmem:[%s303 + $0x33c] sm:$0xff]
        %v526 = vld [vmem:[%s303 + $0x344] sm:$0xf]
        %v527 = vld [vmem:[%s303 + $0x348] sm:$0xff]
        %v528 = vld [vmem:[%s303 + $0x350] sm:$0xf]
        %v529 = vld [vmem:[%s303 + $0x354] sm:$0xff]
        %v530 = vld [vmem:[%s303 + $0x35c] sm:$0xf]
        %v531 = vld [vmem:[%s303 + $0x360] sm:$0xff]
        %v532 = vld [vmem:[%s303 + $0x368] sm:$0xf]
        %v533 = vld [vmem:[%s303 + $0x36c] sm:$0xff]
        %v534 = vld [vmem:[%s303 + $0x374] sm:$0xf]
        %v535 = vld [vmem:[%s303 + $0x378] sm:$0xff]
        %v536 = vld [vmem:[%s303 + $0x380] sm:$0xf]
        %v537 = vld [vmem:[%s303 + $0x384] sm:$0xff]
        %v538 = vld [vmem:[%s303 + $0x38c] sm:$0xf]
        %v539 = vld [vmem:[%s303 + $0x390] sm:$0xff]
        %v540 = vld [vmem:[%s303 + $0x398] sm:$0xf]
        %v541 = vld [vmem:[%s303 + $0x39c] sm:$0xff]
        %v542 = vld [vmem:[%s303 + $0x3a4] sm:$0xf]
        %v543 = vld [vmem:[%s303 + $0x3a8] sm:$0xff]
        %v544 = vld [vmem:[%s303 + $0x3b0] sm:$0xf]
        %v545 = vld [vmem:[%s303 + $0x3b4] sm:$0xff]
        %v546 = vld [vmem:[%s303 + $0x3bc] sm:$0xf]
        %v547 = vld [vmem:[%s303 + $0x3c0] sm:$0xff]
        %v548 = vld [vmem:[%s303 + $0x3c8] sm:$0xf]
        %v549 = vld [vmem:[%s303 + $0x3cc] sm:$0xff]
        %v550 = vld [vmem:[%s303 + $0x3d4] sm:$0xf]
        %v551 = vld [vmem:[%s303 + $0x3d8] sm:$0xff]
        %v552 = vld [vmem:[%s303 + $0x3e0] sm:$0xf]
        %v553 = vld [vmem:[%s303 + $0x3e4] sm:$0xff]
        %v554 = vld [vmem:[%s303 + $0x3ec] sm:$0xf]
        %v555 = vld [vmem:[%s303 + $0x3f0] sm:$0xff]
        %v556 = vld [vmem:[%s303 + $0x3f8] sm:$0xf]
        %v557 = vld [vmem:[%s303 + $0x3fc] sm:$0xff]
        %v558 = vld [vmem:[%s303 + $0x404] sm:$0xf]
        %v559 = vld [vmem:[%s303 + $0x408] sm:$0xff]
        %v560 = vld [vmem:[%s303 + $0x410] sm:$0xf]
        %v561 = vld [vmem:[%s303 + $0x414] sm:$0xff]
        %v562 = vld [vmem:[%s303 + $0x41c] sm:$0xf]
        %v563 = vld [vmem:[%s303 + $0x420] sm:$0xff]
        %v564 = vld [vmem:[%s303 + $0x428] sm:$0xf]
        %v565 = vld [vmem:[%s303 + $0x42c] sm:$0xff]
        %v566 = vld [vmem:[%s303 + $0x434] sm:$0xf]
        %v567 = vld [vmem:[%s303 + $0x438] sm:$0xff]
        %v568 = vld [vmem:[%s303 + $0x440] sm:$0xf]
        %v569 = vld [vmem:[%s303 + $0x444] sm:$0xff]
        %v570 = vld [vmem:[%s303 + $0x44c] sm:$0xf]
        %v571 = vld [vmem:[%s303 + $0x450] sm:$0xff]
        %v572 = vld [vmem:[%s303 + $0x458] sm:$0xf]
        %v573 = vld [vmem:[%s303 + $0x45c] sm:$0xff]
        %v574 = vld [vmem:[%s303 + $0x464] sm:$0xf]
        %v575 = vld [vmem:[%s303 + $0x468] sm:$0xff]
        %v576 = vld [vmem:[%s303 + $0x470] sm:$0xf]
        %v577 = vld [vmem:[%s303 + $0x474] sm:$0xff]
        %v578 = vld [vmem:[%s303 + $0x47c] sm:$0xf]
        %v579 = vld [vmem:[%s312] sm:$0x7]
        %v581 = vlaneseq
        %v582 = vshrl.u32 %v581, 7
        %v583 = vsub.s32 0, %v582
        %v584 = vrot.slane %v579, %v583
        %v585 = vlaneseq
        %v586 = vshrl.u32 %v585, 7
        %v587 = vsub.s32 1, %v586
        %v588 = vrot.slane %v579, %v587
        %v589 = vlaneseq
        %v590 = vshrl.u32 %v589, 7
        %v591 = vsub.s32 2, %v590
        %v592 = vrot.slane %v579, %v591
        %v788 = vunpack.c.l.b16 %v387
        %v789 = vunpack.c.h.b16 %v387
        %v790 = vunpack.c.l.b16 %v388
        %v791 = vunpack.c.l.b16 %v389
        %v792 = vunpack.c.h.b16 %v389
        %v793 = vunpack.c.l.b16 %v390
        %v794 = vunpack.c.l.b16 %v391
        %v795 = vunpack.c.h.b16 %v391
        %v796 = vunpack.c.l.b16 %v392
        %v797 = vunpack.c.l.b16 %v393
        %v798 = vunpack.c.h.b16 %v393
        %v799 = vunpack.c.l.b16 %v394
        %v800 = vunpack.c.l.b16 %v395
        %v801 = vunpack.c.h.b16 %v395
        %v802 = vunpack.c.l.b16 %v396
        %v803 = vunpack.c.l.b16 %v397
        %v804 = vunpack.c.h.b16 %v397
        %v805 = vunpack.c.l.b16 %v398
        %v806 = vunpack.c.l.b16 %v399
        %v807 = vunpack.c.h.b16 %v399
        %v808 = vunpack.c.l.b16 %v400
        %v809 = vunpack.c.l.b16 %v401
        %v810 = vunpack.c.h.b16 %v401
        %v811 = vunpack.c.l.b16 %v402
        %v812 = vunpack.c.l.b16 %v403
        %v813 = vunpack.c.h.b16 %v403
        %v814 = vunpack.c.l.b16 %v404
        %v815 = vunpack.c.l.b16 %v405
        %v816 = vunpack.c.h.b16 %v405
        %v817 = vunpack.c.l.b16 %v406
        %v818 = vunpack.c.l.b16 %v407
        %v819 = vunpack.c.h.b16 %v407
        %v820 = vunpack.c.l.b16 %v408
        %v821 = vunpack.c.l.b16 %v409
        %v822 = vunpack.c.h.b16 %v409
        %v823 = vunpack.c.l.b16 %v410
        %v824 = vunpack.c.l.b16 %v411
        %v825 = vunpack.c.h.b16 %v411
        %v826 = vunpack.c.l.b16 %v412
        %v827 = vunpack.c.l.b16 %v413
        %v828 = vunpack.c.h.b16 %v413
        %v829 = vunpack.c.l.b16 %v414
        %v830 = vunpack.c.l.b16 %v415
        %v831 = vunpack.c.h.b16 %v415
        %v832 = vunpack.c.l.b16 %v416
        %v833 = vunpack.c.l.b16 %v417
        %v834 = vunpack.c.h.b16 %v417
        %v835 = vunpack.c.l.b16 %v418
        %v836 = vunpack.c.l.b16 %v419
        %v837 = vunpack.c.h.b16 %v419
        %v838 = vunpack.c.l.b16 %v420
        %v839 = vunpack.c.l.b16 %v421
        %v840 = vunpack.c.h.b16 %v421
        %v841 = vunpack.c.l.b16 %v422
        %v842 = vunpack.c.l.b16 %v423
        %v843 = vunpack.c.h.b16 %v423
        %v844 = vunpack.c.l.b16 %v424
        %v845 = vunpack.c.l.b16 %v425
        %v846 = vunpack.c.h.b16 %v425
        %v847 = vunpack.c.l.b16 %v426
        %v848 = vunpack.c.l.b16 %v427
        %v849 = vunpack.c.h.b16 %v427
        %v850 = vunpack.c.l.b16 %v428
        %v851 = vunpack.c.l.b16 %v429
        %v852 = vunpack.c.h.b16 %v429
        %v853 = vunpack.c.l.b16 %v430
        %v854 = vunpack.c.l.b16 %v431
        %v855 = vunpack.c.h.b16 %v431
        %v856 = vunpack.c.l.b16 %v432
        %v857 = vunpack.c.l.b16 %v433
        %v858 = vunpack.c.h.b16 %v433
        %v859 = vunpack.c.l.b16 %v434
        %v860 = vunpack.c.l.b16 %v435
        %v861 = vunpack.c.h.b16 %v435
        %v862 = vunpack.c.l.b16 %v436
        %v863 = vunpack.c.l.b16 %v437
        %v864 = vunpack.c.h.b16 %v437
        %v865 = vunpack.c.l.b16 %v438
        %v866 = vunpack.c.l.b16 %v439
        %v867 = vunpack.c.h.b16 %v439
        %v868 = vunpack.c.l.b16 %v440
        %v869 = vunpack.c.l.b16 %v441
        %v870 = vunpack.c.h.b16 %v441
        %v871 = vunpack.c.l.b16 %v442
        %v872 = vunpack.c.l.b16 %v443
        %v873 = vunpack.c.h.b16 %v443
        %v874 = vunpack.c.l.b16 %v444
        %v875 = vunpack.c.l.b16 %v445
        %v876 = vunpack.c.h.b16 %v445
        %v877 = vunpack.c.l.b16 %v446
        %v878 = vunpack.c.l.b16 %v447
        %v879 = vunpack.c.h.b16 %v447
        %v880 = vunpack.c.l.b16 %v448
        %v881 = vunpack.c.l.b16 %v449
        %v882 = vunpack.c.h.b16 %v449
        %v883 = vunpack.c.l.b16 %v450
        %v884 = vunpack.c.l.b16 %v451
        %v885 = vunpack.c.h.b16 %v451
        %v886 = vunpack.c.l.b16 %v452
        %v887 = vunpack.c.l.b16 %v453
        %v888 = vunpack.c.h.b16 %v453
        %v889 = vunpack.c.l.b16 %v454
        %v890 = vunpack.c.l.b16 %v455
        %v891 = vunpack.c.h.b16 %v455
        %v892 = vunpack.c.l.b16 %v456
        %v893 = vunpack.c.l.b16 %v457
        %v894 = vunpack.c.h.b16 %v457
        %v895 = vunpack.c.l.b16 %v458
        %v896 = vunpack.c.l.b16 %v459
        %v897 = vunpack.c.h.b16 %v459
        %v898 = vunpack.c.l.b16 %v460
        %v899 = vunpack.c.l.b16 %v461
        %v900 = vunpack.c.h.b16 %v461
        %v901 = vunpack.c.l.b16 %v462
        %v902 = vunpack.c.l.b16 %v463
        %v903 = vunpack.c.h.b16 %v463
        %v904 = vunpack.c.l.b16 %v464
        %v905 = vunpack.c.l.b16 %v465
        %v906 = vunpack.c.h.b16 %v465
        %v907 = vunpack.c.l.b16 %v466
        %v908 = vunpack.c.l.b16 %v467
        %v909 = vunpack.c.h.b16 %v467
        %v910 = vunpack.c.l.b16 %v468
        %v911 = vunpack.c.l.b16 %v469
        %v912 = vunpack.c.h.b16 %v469
        %v913 = vunpack.c.l.b16 %v470
        %v914 = vunpack.c.l.b16 %v471
        %v915 = vunpack.c.h.b16 %v471
        %v916 = vunpack.c.l.b16 %v472
        %v917 = vunpack.c.l.b16 %v473
        %v918 = vunpack.c.h.b16 %v473
        %v919 = vunpack.c.l.b16 %v474
        %v920 = vunpack.c.l.b16 %v475
        %v921 = vunpack.c.h.b16 %v475
        %v922 = vunpack.c.l.b16 %v476
        %v923 = vunpack.c.l.b16 %v477
        %v924 = vunpack.c.h.b16 %v477
        %v925 = vunpack.c.l.b16 %v478
        %v926 = vunpack.c.l.b16 %v479
        %v927 = vunpack.c.h.b16 %v479
        %v928 = vunpack.c.l.b16 %v480
        %v929 = vunpack.c.l.b16 %v481
        %v930 = vunpack.c.h.b16 %v481
        %v931 = vunpack.c.l.b16 %v482
        %v932 = vunpack.c.l.b16 %v483
        %v933 = vunpack.c.h.b16 %v483
        %v934 = vunpack.c.l.b16 %v484
        %v935 = vunpack.c.l.b16 %v485
        %v936 = vunpack.c.h.b16 %v485
        %v937 = vunpack.c.l.b16 %v486
        %v938 = vunpack.c.l.b16 %v487
        %v939 = vunpack.c.h.b16 %v487
        %v940 = vunpack.c.l.b16 %v488
        %v941 = vunpack.c.l.b16 %v489
        %v942 = vunpack.c.h.b16 %v489
        %v943 = vunpack.c.l.b16 %v490
        %v944 = vunpack.c.l.b16 %v491
        %v945 = vunpack.c.h.b16 %v491
        %v946 = vunpack.c.l.b16 %v492
        %v947 = vunpack.c.l.b16 %v493
        %v948 = vunpack.c.h.b16 %v493
        %v949 = vunpack.c.l.b16 %v494
        %v950 = vunpack.c.l.b16 %v495
        %v951 = vunpack.c.h.b16 %v495
        %v952 = vunpack.c.l.b16 %v496
        %v953 = vunpack.c.l.b16 %v497
        %v954 = vunpack.c.h.b16 %v497
        %v955 = vunpack.c.l.b16 %v498
        %v956 = vunpack.c.l.b16 %v499
        %v957 = vunpack.c.h.b16 %v499
        %v958 = vunpack.c.l.b16 %v500
        %v959 = vunpack.c.l.b16 %v501
        %v960 = vunpack.c.h.b16 %v501
        %v961 = vunpack.c.l.b16 %v502
        %v962 = vunpack.c.l.b16 %v503
        %v963 = vunpack.c.h.b16 %v503
        %v964 = vunpack.c.l.b16 %v504
        %v965 = vunpack.c.l.b16 %v505
        %v966 = vunpack.c.h.b16 %v505
        %v967 = vunpack.c.l.b16 %v506
        %v968 = vunpack.c.l.b16 %v507
        %v969 = vunpack.c.h.b16 %v507
        %v970 = vunpack.c.l.b16 %v508
        %v971 = vunpack.c.l.b16 %v509
        %v972 = vunpack.c.h.b16 %v509
        %v973 = vunpack.c.l.b16 %v510
        %v974 = vunpack.c.l.b16 %v511
        %v975 = vunpack.c.h.b16 %v511
        %v976 = vunpack.c.l.b16 %v512
        %v977 = vunpack.c.l.b16 %v513
        %v978 = vunpack.c.h.b16 %v513
        %v979 = vunpack.c.l.b16 %v514
        %v980 = vunpack.c.l.b16 %v515
        %v981 = vunpack.c.h.b16 %v515
        %v982 = vunpack.c.l.b16 %v516
        %v983 = vunpack.c.l.b16 %v517
        %v984 = vunpack.c.h.b16 %v517
        %v985 = vunpack.c.l.b16 %v518
        %v986 = vunpack.c.l.b16 %v519
        %v987 = vunpack.c.h.b16 %v519
        %v988 = vunpack.c.l.b16 %v520
        %v989 = vunpack.c.l.b16 %v521
        %v990 = vunpack.c.h.b16 %v521
        %v991 = vunpack.c.l.b16 %v522
        %v992 = vunpack.c.l.b16 %v523
        %v993 = vunpack.c.h.b16 %v523
        %v994 = vunpack.c.l.b16 %v524
        %v995 = vunpack.c.l.b16 %v525
        %v996 = vunpack.c.h.b16 %v525
        %v997 = vunpack.c.l.b16 %v526
        %v998 = vunpack.c.l.b16 %v527
        %v999 = vunpack.c.h.b16 %v527
        %v1000 = vunpack.c.l.b16 %v528
        %v1001 = vunpack.c.l.b16 %v529
        %v1002 = vunpack.c.h.b16 %v529
        %v1003 = vunpack.c.l.b16 %v530
        %v1004 = vunpack.c.l.b16 %v531
        %v1005 = vunpack.c.h.b16 %v531
        %v1006 = vunpack.c.l.b16 %v532
        %v1007 = vunpack.c.l.b16 %v533
        %v1008 = vunpack.c.h.b16 %v533
        %v1009 = vunpack.c.l.b16 %v534
        %v1010 = vunpack.c.l.b16 %v535
        %v1011 = vunpack.c.h.b16 %v535
        %v1012 = vunpack.c.l.b16 %v536
        %v1013 = vunpack.c.l.b16 %v537
        %v1014 = vunpack.c.h.b16 %v537
        %v1015 = vunpack.c.l.b16 %v538
        %v1016 = vunpack.c.l.b16 %v539
        %v1017 = vunpack.c.h.b16 %v539
        %v1018 = vunpack.c.l.b16 %v540
        %v1019 = vunpack.c.l.b16 %v541
        %v1020 = vunpack.c.h.b16 %v541
        %v1021 = vunpack.c.l.b16 %v542
        %v1022 = vunpack.c.l.b16 %v543
        %v1023 = vunpack.c.h.b16 %v543
        %v1024 = vunpack.c.l.b16 %v544
        %v1025 = vunpack.c.l.b16 %v545
        %v1026 = vunpack.c.h.b16 %v545
        %v1027 = vunpack.c.l.b16 %v546
        %v1028 = vunpack.c.l.b16 %v547
        %v1029 = vunpack.c.h.b16 %v547
        %v1030 = vunpack.c.l.b16 %v548
        %v1031 = vunpack.c.l.b16 %v549
        %v1032 = vunpack.c.h.b16 %v549
        %v1033 = vunpack.c.l.b16 %v550
        %v1034 = vunpack.c.l.b16 %v551
        %v1035 = vunpack.c.h.b16 %v551
        %v1036 = vunpack.c.l.b16 %v552
        %v1037 = vunpack.c.l.b16 %v553
        %v1038 = vunpack.c.h.b16 %v553
        %v1039 = vunpack.c.l.b16 %v554
        %v1040 = vunpack.c.l.b16 %v555
        %v1041 = vunpack.c.h.b16 %v555
        %v1042 = vunpack.c.l.b16 %v556
        %v1043 = vunpack.c.l.b16 %v557
        %v1044 = vunpack.c.h.b16 %v557
        %v1045 = vunpack.c.l.b16 %v558
        %v1046 = vunpack.c.l.b16 %v559
        %v1047 = vunpack.c.h.b16 %v559
        %v1048 = vunpack.c.l.b16 %v560
        %v1049 = vunpack.c.l.b16 %v561
        %v1050 = vunpack.c.h.b16 %v561
        %v1051 = vunpack.c.l.b16 %v562
        %v1052 = vunpack.c.l.b16 %v563
        %v1053 = vunpack.c.h.b16 %v563
        %v1054 = vunpack.c.l.b16 %v564
        %v1055 = vunpack.c.l.b16 %v565
        %v1056 = vunpack.c.h.b16 %v565
        %v1057 = vunpack.c.l.b16 %v566
        %v1058 = vunpack.c.l.b16 %v567
        %v1059 = vunpack.c.h.b16 %v567
        %v1060 = vunpack.c.l.b16 %v568
        %v1061 = vunpack.c.l.b16 %v569
        %v1062 = vunpack.c.h.b16 %v569
        %v1063 = vunpack.c.l.b16 %v570
        %v1064 = vunpack.c.l.b16 %v571
        %v1065 = vunpack.c.h.b16 %v571
        %v1066 = vunpack.c.l.b16 %v572
        %v1067 = vunpack.c.l.b16 %v573
        %v1068 = vunpack.c.h.b16 %v573
        %v1069 = vunpack.c.l.b16 %v574
        %v1070 = vunpack.c.l.b16 %v575
        %v1071 = vunpack.c.h.b16 %v575
        %v1072 = vunpack.c.l.b16 %v576
        %v1073 = vunpack.c.l.b16 %v577
        %v1074 = vunpack.c.h.b16 %v577
        %v1075 = vunpack.c.l.b16 %v578
        %v1076 = vpack.c.b16 %v791, %v788
        %v1077 = vpack.c.b16 %v792, %v789
        %v1078 = vpack.c.b16 %v793, %v790
        %v1079 = vpack.c.b16 %v797, %v794
        %v1080 = vpack.c.b16 %v798, %v795
        %v1081 = vpack.c.b16 %v799, %v796
        %v1082 = vpack.c.b16 %v803, %v800
        %v1083 = vpack.c.b16 %v804, %v801
        %v1084 = vpack.c.b16 %v805, %v802
        %v1085 = vpack.c.b16 %v809, %v806
        %v1086 = vpack.c.b16 %v810, %v807
        %v1087 = vpack.c.b16 %v811, %v808
        %v1088 = vpack.c.b16 %v815, %v812
        %v1089 = vpack.c.b16 %v816, %v813
        %v1090 = vpack.c.b16 %v817, %v814
        %v1091 = vpack.c.b16 %v821, %v818
        %v1092 = vpack.c.b16 %v822, %v819
        %v1093 = vpack.c.b16 %v823, %v820
        %v1094 = vpack.c.b16 %v827, %v824
        %v1095 = vpack.c.b16 %v828, %v825
        %v1096 = vpack.c.b16 %v829, %v826
        %v1097 = vpack.c.b16 %v833, %v830
        %v1098 = vpack.c.b16 %v834, %v831
        %v1099 = vpack.c.b16 %v835, %v832
        %v1100 = vpack.c.b16 %v839, %v836
        %v1101 = vpack.c.b16 %v840, %v837
        %v1102 = vpack.c.b16 %v841, %v838
        %v1103 = vpack.c.b16 %v845, %v842
        %v1104 = vpack.c.b16 %v846, %v843
        %v1105 = vpack.c.b16 %v847, %v844
        %v1106 = vpack.c.b16 %v851, %v848
        %v1107 = vpack.c.b16 %v852, %v849
        %v1108 = vpack.c.b16 %v853, %v850
        %v1109 = vpack.c.b16 %v857, %v854
        %v1110 = vpack.c.b16 %v858, %v855
        %v1111 = vpack.c.b16 %v859, %v856
        %v1112 = vpack.c.b16 %v863, %v860
        %v1113 = vpack.c.b16 %v864, %v861
        %v1114 = vpack.c.b16 %v865, %v862
        %v1115 = vpack.c.b16 %v869, %v866
        %v1116 = vpack.c.b16 %v870, %v867
        %v1117 = vpack.c.b16 %v871, %v868
        %v1118 = vpack.c.b16 %v875, %v872
        %v1119 = vpack.c.b16 %v876, %v873
        %v1120 = vpack.c.b16 %v877, %v874
        %v1121 = vpack.c.b16 %v881, %v878
        %v1122 = vpack.c.b16 %v882, %v879
        %v1123 = vpack.c.b16 %v883, %v880
        %v1124 = vpack.c.b16 %v887, %v884
        %v1125 = vpack.c.b16 %v888, %v885
        %v1126 = vpack.c.b16 %v889, %v886
        %v1127 = vpack.c.b16 %v893, %v890
        %v1128 = vpack.c.b16 %v894, %v891
        %v1129 = vpack.c.b16 %v895, %v892
        %v1130 = vpack.c.b16 %v899, %v896
        %v1131 = vpack.c.b16 %v900, %v897
        %v1132 = vpack.c.b16 %v901, %v898
        %v1133 = vpack.c.b16 %v905, %v902
        %v1134 = vpack.c.b16 %v906, %v903
        %v1135 = vpack.c.b16 %v907, %v904
        %v1136 = vpack.c.b16 %v911, %v908
        %v1137 = vpack.c.b16 %v912, %v909
        %v1138 = vpack.c.b16 %v913, %v910
        %v1139 = vpack.c.b16 %v917, %v914
        %v1140 = vpack.c.b16 %v918, %v915
        %v1141 = vpack.c.b16 %v919, %v916
        %v1142 = vpack.c.b16 %v923, %v920
        %v1143 = vpack.c.b16 %v924, %v921
        %v1144 = vpack.c.b16 %v925, %v922
        %v1145 = vpack.c.b16 %v929, %v926
        %v1146 = vpack.c.b16 %v930, %v927
        %v1147 = vpack.c.b16 %v931, %v928
        %v1148 = vpack.c.b16 %v935, %v932
        %v1149 = vpack.c.b16 %v936, %v933
        %v1150 = vpack.c.b16 %v937, %v934
        %v1151 = vpack.c.b16 %v941, %v938
        %v1152 = vpack.c.b16 %v942, %v939
        %v1153 = vpack.c.b16 %v943, %v940
        %v1154 = vpack.c.b16 %v947, %v944
        %v1155 = vpack.c.b16 %v948, %v945
        %v1156 = vpack.c.b16 %v949, %v946
        %v1157 = vpack.c.b16 %v953, %v950
        %v1158 = vpack.c.b16 %v954, %v951
        %v1159 = vpack.c.b16 %v955, %v952
        %v1160 = vpack.c.b16 %v959, %v956
        %v1161 = vpack.c.b16 %v960, %v957
        %v1162 = vpack.c.b16 %v961, %v958
        %v1163 = vpack.c.b16 %v965, %v962
        %v1164 = vpack.c.b16 %v966, %v963
        %v1165 = vpack.c.b16 %v967, %v964
        %v1166 = vpack.c.b16 %v971, %v968
        %v1167 = vpack.c.b16 %v972, %v969
        %v1168 = vpack.c.b16 %v973, %v970
        %v1169 = vpack.c.b16 %v977, %v974
        %v1170 = vpack.c.b16 %v978, %v975
        %v1171 = vpack.c.b16 %v979, %v976
        %v1172 = vpack.c.b16 %v983, %v980
        %v1173 = vpack.c.b16 %v984, %v981
        %v1174 = vpack.c.b16 %v985, %v982
        %v1175 = vpack.c.b16 %v989, %v986
        %v1176 = vpack.c.b16 %v990, %v987
        %v1177 = vpack.c.b16 %v991, %v988
        %v1178 = vpack.c.b16 %v995, %v992
        %v1179 = vpack.c.b16 %v996, %v993
        %v1180 = vpack.c.b16 %v997, %v994
        %v1181 = vpack.c.b16 %v1001, %v998
        %v1182 = vpack.c.b16 %v1002, %v999
        %v1183 = vpack.c.b16 %v1003, %v1000
        %v1184 = vpack.c.b16 %v1007, %v1004
        %v1185 = vpack.c.b16 %v1008, %v1005
        %v1186 = vpack.c.b16 %v1009, %v1006
        %v1187 = vpack.c.b16 %v1013, %v1010
        %v1188 = vpack.c.b16 %v1014, %v1011
        %v1189 = vpack.c.b16 %v1015, %v1012
        %v1190 = vpack.c.b16 %v1019, %v1016
        %v1191 = vpack.c.b16 %v1020, %v1017
        %v1192 = vpack.c.b16 %v1021, %v1018
        %v1193 = vpack.c.b16 %v1025, %v1022
        %v1194 = vpack.c.b16 %v1026, %v1023
        %v1195 = vpack.c.b16 %v1027, %v1024
        %v1196 = vpack.c.b16 %v1031, %v1028
        %v1197 = vpack.c.b16 %v1032, %v1029
        %v1198 = vpack.c.b16 %v1033, %v1030
        %v1199 = vpack.c.b16 %v1037, %v1034
        %v1200 = vpack.c.b16 %v1038, %v1035
        %v1201 = vpack.c.b16 %v1039, %v1036
        %v1202 = vpack.c.b16 %v1043, %v1040
        %v1203 = vpack.c.b16 %v1044, %v1041
        %v1204 = vpack.c.b16 %v1045, %v1042
        %v1205 = vpack.c.b16 %v1049, %v1046
        %v1206 = vpack.c.b16 %v1050, %v1047
        %v1207 = vpack.c.b16 %v1051, %v1048
        %v1208 = vpack.c.b16 %v1055, %v1052
        %v1209 = vpack.c.b16 %v1056, %v1053
        %v1210 = vpack.c.b16 %v1057, %v1054
        %v1211 = vpack.c.b16 %v1061, %v1058
        %v1212 = vpack.c.b16 %v1062, %v1059
        %v1213 = vpack.c.b16 %v1063, %v1060
        %v1214 = vpack.c.b16 %v1067, %v1064
        %v1215 = vpack.c.b16 %v1068, %v1065
        %v1216 = vpack.c.b16 %v1069, %v1066
        %v1217 = vpack.c.b16 %v1073, %v1070
        %v1218 = vpack.c.b16 %v1074, %v1071
        %v1219 = vpack.c.b16 %v1075, %v1072
        %1364 = vmatprep.subr.bf16.mxu0 %v1098
        %1365 = vmatpush1.bf16.msra.mxu0 %v1097
        %1366 = vmatprep.subr.bf16.mxu0 %v1095
        %1367 = vmatpush1.bf16.msra.mxu0 %v1094
        %1368 = vmatprep.subr.bf16.mxu0 %v1092
        %1369 = vmatpush1.bf16.msra.mxu0 %v1091
        %1370 = vmatprep.subr.bf16.mxu0 %v1089
        %1371 = vmatpush1.bf16.msra.mxu0 %v1088
        %1372 = vmatprep.subr.bf16.mxu0 %v1086
        %1373 = vmatpush1.bf16.msra.mxu0 %v1085
        %1374 = vmatprep.subr.bf16.mxu0 %v1083
        %1375 = vmatpush1.bf16.msra.mxu0 %v1082
        %1376 = vmatprep.subr.bf16.mxu0 %v1080
        %1377 = vmatpush1.bf16.msra.mxu0 %v1079
        %1378 = vmatprep.subr.bf16.mxu0 %v1077
        %1379 = vmatpush1.bf16.msra.mxu0 %v1076
        %1380 = vmatprep.subr.bf16.mxu0 %v1122
        %1381 = vmatpush2.bf16.msra.mxu0 %v1121
        %1382 = vmatprep.subr.bf16.mxu0 %v1119
        %1383 = vmatpush2.bf16.msra.mxu0 %v1118
        %1384 = vmatprep.subr.bf16.mxu0 %v1116
        %1385 = vmatpush2.bf16.msra.mxu0 %v1115
        %1386 = vmatprep.subr.bf16.mxu0 %v1113
        %1387 = vmatpush2.bf16.msra.mxu0 %v1112
        %1388 = vmatprep.subr.bf16.mxu0 %v1110
        %1389 = vmatpush2.bf16.msra.mxu0 %v1109
        %1390 = vmatprep.subr.bf16.mxu0 %v1107
        %1391 = vmatpush2.bf16.msra.mxu0 %v1106
        %1392 = vmatprep.subr.bf16.mxu0 %v1104
        %1393 = vmatpush2.bf16.msra.mxu0 %v1103
        %1394 = vmatprep.subr.bf16.mxu0 %v1101
        %1395 = vmatpush2.bf16.msra.mxu0 %v1100
        %1396 = vmatprep.mubr.bf16.mxu0 %v382
        %1397 = vmatmul.mubr.bf16.gmra.mxu0 %v381
        %v1398 = vpop.f32.mrf.mxu0
        %v1399 = vadd.f32 %v584, %v1398
        %v1400 = vpop.f32.mrf.mxu0
        %v1401 = vadd.f32 %v588, %v1400
        %v1402 = vpop.f32.mrf.mxu0
        %v1403 = vpop.f32.mrf.mxu0
        %1404 = vdwg.mxu0
        %1405 = vmatprep.subr.bf16.mxu0 %v1146
        %1406 = vmatpush1.bf16.msra.mxu0 %v1145
        %1407 = vmatprep.subr.bf16.mxu0 %v1143
        %1408 = vmatpush1.bf16.msra.mxu0 %v1142
        %1409 = vmatprep.subr.bf16.mxu0 %v1140
        %1410 = vmatpush1.bf16.msra.mxu0 %v1139
        %1411 = vmatprep.subr.bf16.mxu0 %v1137
        %1412 = vmatpush1.bf16.msra.mxu0 %v1136
        %1413 = vmatprep.subr.bf16.mxu0 %v1134
        %1414 = vmatpush1.bf16.msra.mxu0 %v1133
        %1415 = vmatprep.subr.bf16.mxu0 %v1131
        %1416 = vmatpush1.bf16.msra.mxu0 %v1130
        %1417 = vmatprep.subr.bf16.mxu0 %v1128
        %1418 = vmatpush1.bf16.msra.mxu0 %v1127
        %1419 = vmatprep.subr.bf16.mxu0 %v1125
        %1420 = vmatpush1.bf16.msra.mxu0 %v1124
        %1421 = vmatprep.subr.bf16.mxu0 %v1170
        %1422 = vmatpush2.bf16.msra.mxu0 %v1169
        %1423 = vmatprep.subr.bf16.mxu0 %v1167
        %1424 = vmatpush2.bf16.msra.mxu0 %v1166
        %1425 = vmatprep.subr.bf16.mxu0 %v1164
        %1426 = vmatpush2.bf16.msra.mxu0 %v1163
        %1427 = vmatprep.subr.bf16.mxu0 %v1161
        %1428 = vmatpush2.bf16.msra.mxu0 %v1160
        %1429 = vmatprep.subr.bf16.mxu0 %v1158
        %1430 = vmatpush2.bf16.msra.mxu0 %v1157
        %1431 = vmatprep.subr.bf16.mxu0 %v1155
        %1432 = vmatpush2.bf16.msra.mxu0 %v1154
        %1433 = vmatprep.subr.bf16.mxu0 %v1152
        %1434 = vmatpush2.bf16.msra.mxu0 %v1151
        %1435 = vmatprep.subr.bf16.mxu0 %v1149
        %1436 = vmatpush2.bf16.msra.mxu0 %v1148
        %1437 = vmatprep.mubr.bf16.mxu0 %v384
        %1438 = vmatmul.mubr.bf16.gmra.mxu0 %v383
        %v1439 = vpop.f32.mrf.mxu0
        %v1440 = vadd.f32 %v1399, %v1439
        %v1441 = vpop.f32.mrf.mxu0
        %v1442 = vadd.f32 %v1401, %v1441
        %v1443 = vpop.f32.mrf.mxu0
        %v1444 = vpop.f32.mrf.mxu0
        %1445 = vdwg.mxu0
        %1446 = vmatprep.subr.bf16.mxu0 %v1194
        %1447 = vmatpush1.bf16.msra.mxu0 %v1193
        %1448 = vmatprep.subr.bf16.mxu0 %v1191
        %1449 = vmatpush1.bf16.msra.mxu0 %v1190
        %1450 = vmatprep.subr.bf16.mxu0 %v1188
        %1451 = vmatpush1.bf16.msra.mxu0 %v1187
        %1452 = vmatprep.subr.bf16.mxu0 %v1185
        %1453 = vmatpush1.bf16.msra.mxu0 %v1184
        %1454 = vmatprep.subr.bf16.mxu0 %v1182
        %1455 = vmatpush1.bf16.msra.mxu0 %v1181
        %1456 = vmatprep.subr.bf16.mxu0 %v1179
        %1457 = vmatpush1.bf16.msra.mxu0 %v1178
        %1458 = vmatprep.subr.bf16.mxu0 %v1176
        %1459 = vmatpush1.bf16.msra.mxu0 %v1175
        %1460 = vmatprep.subr.bf16.mxu0 %v1173
        %1461 = vmatpush1.bf16.msra.mxu0 %v1172
        %1462 = vmatprep.subr.bf16.mxu0 %v1218
        %1463 = vmatpush2.bf16.msra.mxu0 %v1217
        %1464 = vmatprep.subr.bf16.mxu0 %v1215
        %1465 = vmatpush2.bf16.msra.mxu0 %v1214
        %1466 = vmatprep.subr.bf16.mxu0 %v1212
        %1467 = vmatpush2.bf16.msra.mxu0 %v1211
        %1468 = vmatprep.subr.bf16.mxu0 %v1209
        %1469 = vmatpush2.bf16.msra.mxu0 %v1208
        %1470 = vmatprep.subr.bf16.mxu0 %v1206
        %1471 = vmatpush2.bf16.msra.mxu0 %v1205
        %1472 = vmatprep.subr.bf16.mxu0 %v1203
        %1473 = vmatpush2.bf16.msra.mxu0 %v1202
        %1474 = vmatprep.subr.bf16.mxu0 %v1200
        %1475 = vmatpush2.bf16.msra.mxu0 %v1199
        %1476 = vmatprep.subr.bf16.mxu0 %v1197
        %1477 = vmatpush2.bf16.msra.mxu0 %v1196
        %1478 = vmatprep.mubr.bf16.mxu0 %v386
        %1479 = vmatmul.mubr.bf16.gmra.mxu0 %v385
        %v1480 = vpop.f32.mrf.mxu0
        %v1481 = vadd.f32 %v1440, %v1480
        %v1482 = vpop.f32.mrf.mxu0
        %v1483 = vadd.f32 %v1442, %v1482
        %v1484 = vpop.f32.mrf.mxu0
        %v1485 = vpop.f32.mrf.mxu0
        %1486 = vdwg.mxu0
        %1487 = vmatprep.subr.bf16.mxu0 0
        %1488 = vmatpush1.bf16.msra.mxu0 %v1099
        %1489 = vmatprep.subr.bf16.mxu0 0
        %1490 = vmatpush1.bf16.msra.mxu0 %v1096
        %1491 = vmatprep.subr.bf16.mxu0 0
        %1492 = vmatpush1.bf16.msra.mxu0 %v1093
        %1493 = vmatprep.subr.bf16.mxu0 0
        %1494 = vmatpush1.bf16.msra.mxu0 %v1090
        %1495 = vmatprep.subr.bf16.mxu0 0
        %1496 = vmatpush1.bf16.msra.mxu0 %v1087
        %1497 = vmatprep.subr.bf16.mxu0 0
        %1498 = vmatpush1.bf16.msra.mxu0 %v1084
        %1499 = vmatprep.subr.bf16.mxu0 0
        %1500 = vmatpush1.bf16.msra.mxu0 %v1081
        %1501 = vmatprep.subr.bf16.mxu0 0
        %1502 = vmatpush1.bf16.msra.mxu0 %v1078
        %1503 = vmatprep.subr.bf16.mxu0 0
        %1504 = vmatpush2.bf16.msra.mxu0 %v1123
        %1505 = vmatprep.subr.bf16.mxu0 0
        %1506 = vmatpush2.bf16.msra.mxu0 %v1120
        %1507 = vmatprep.subr.bf16.mxu0 0
        %1508 = vmatpush2.bf16.msra.mxu0 %v1117
        %1509 = vmatprep.subr.bf16.mxu0 0
        %1510 = vmatpush2.bf16.msra.mxu0 %v1114
        %1511 = vmatprep.subr.bf16.mxu0 0
        %1512 = vmatpush2.bf16.msra.mxu0 %v1111
        %1513 = vmatprep.subr.bf16.mxu0 0
        %1514 = vmatpush2.bf16.msra.mxu0 %v1108
        %1515 = vmatprep.subr.bf16.mxu0 0
        %1516 = vmatpush2.bf16.msra.mxu0 %v1105
        %1517 = vmatprep.subr.bf16.mxu0 0
        %1518 = vmatpush2.bf16.msra.mxu0 %v1102
        %1519 = vmatprep.mubr.bf16.mxu0 %v382
        %1520 = vmatmul.mubr.bf16.gmra.mxu0 %v381
        %v1521 = vpop.f32.mrf.mxu0
        %v1522 = vadd.f32 %v592, %v1521
        %v1523 = vpop.f32.mrf.mxu0
        %v1524 = vpop.f32.mrf.mxu0
        %v1525 = vpop.f32.mrf.mxu0
        %1526 = vdwg.mxu0
        %1527 = vmatprep.subr.bf16.mxu0 0
        %1528 = vmatpush1.bf16.msra.mxu0 %v1147
        %1529 = vmatprep.subr.bf16.mxu0 0
        %1530 = vmatpush1.bf16.msra.mxu0 %v1144
        %1531 = vmatprep.subr.bf16.mxu0 0
        %1532 = vmatpush1.bf16.msra.mxu0 %v1141
        %1533 = vmatprep.subr.bf16.mxu0 0
        %1534 = vmatpush1.bf16.msra.mxu0 %v1138
        %1535 = vmatprep.subr.bf16.mxu0 0
        %1536 = vmatpush1.bf16.msra.mxu0 %v1135
        %1537 = vmatprep.subr.bf16.mxu0 0
        %1538 = vmatpush1.bf16.msra.mxu0 %v1132
        %1539 = vmatprep.subr.bf16.mxu0 0
        %1540 = vmatpush1.bf16.msra.mxu0 %v1129
        %1541 = vmatprep.subr.bf16.mxu0 0
        %1542 = vmatpush1.bf16.msra.mxu0 %v1126
        %1543 = vmatprep.subr.bf16.mxu0 0
        %1544 = vmatpush2.bf16.msra.mxu0 %v1171
        %1545 = vmatprep.subr.bf16.mxu0 0
        %1546 = vmatpush2.bf16.msra.mxu0 %v1168
        %1547 = vmatprep.subr.bf16.mxu0 0
        %1548 = vmatpush2.bf16.msra.mxu0 %v1165
        %1549 = vmatprep.subr.bf16.mxu0 0
        %1550 = vmatpush2.bf16.msra.mxu0 %v1162
        %1551 = vmatprep.subr.bf16.mxu0 0
        %1552 = vmatpush2.bf16.msra.mxu0 %v1159
        %1553 = vmatprep.subr.bf16.mxu0 0
        %1554 = vmatpush2.bf16.msra.mxu0 %v1156
        %1555 = vmatprep.subr.bf16.mxu0 0
        %1556 = vmatpush2.bf16.msra.mxu0 %v1153
        %1557 = vmatprep.subr.bf16.mxu0 0
        %1558 = vmatpush2.bf16.msra.mxu0 %v1150
        %1559 = vmatprep.mubr.bf16.mxu0 %v384
        %1560 = vmatmul.mubr.bf16.gmra.mxu0 %v383
        %v1561 = vpop.f32.mrf.mxu0
        %v1562 = vadd.f32 %v1522, %v1561
        %v1563 = vpop.f32.mrf.mxu0
        %v1564 = vpop.f32.mrf.mxu0
        %v1565 = vpop.f32.mrf.mxu0
        %1566 = vdwg.mxu0
        %1567 = vmatprep.subr.bf16.mxu0 0
        %1568 = vmatpush1.bf16.msra.mxu0 %v1195
        %1569 = vmatprep.subr.bf16.mxu0 0
        %1570 = vmatpush1.bf16.msra.mxu0 %v1192
        %1571 = vmatprep.subr.bf16.mxu0 0
        %1572 = vmatpush1.bf16.msra.mxu0 %v1189
        %1573 = vmatprep.subr.bf16.mxu0 0
        %1574 = vmatpush1.bf16.msra.mxu0 %v1186
        %1575 = vmatprep.subr.bf16.mxu0 0
        %1576 = vmatpush1.bf16.msra.mxu0 %v1183
        %1577 = vmatprep.subr.bf16.mxu0 0
        %1578 = vmatpush1.bf16.msra.mxu0 %v1180
        %1579 = vmatprep.subr.bf16.mxu0 0
        %1580 = vmatpush1.bf16.msra.mxu0 %v1177
        %1581 = vmatprep.subr.bf16.mxu0 0
        %1582 = vmatpush1.bf16.msra.mxu0 %v1174
        %1583 = vmatprep.subr.bf16.mxu0 0
        %1584 = vmatpush2.bf16.msra.mxu0 %v1219
        %1585 = vmatprep.subr.bf16.mxu0 0
        %1586 = vmatpush2.bf16.msra.mxu0 %v1216
        %1587 = vmatprep.subr.bf16.mxu0 0
        %1588 = vmatpush2.bf16.msra.mxu0 %v1213
        %1589 = vmatprep.subr.bf16.mxu0 0
        %1590 = vmatpush2.bf16.msra.mxu0 %v1210
        %1591 = vmatprep.subr.bf16.mxu0 0
        %1592 = vmatpush2.bf16.msra.mxu0 %v1207
        %1593 = vmatprep.subr.bf16.mxu0 0
        %1594 = vmatpush2.bf16.msra.mxu0 %v1204
        %1595 = vmatprep.subr.bf16.mxu0 0
        %1596 = vmatpush2.bf16.msra.mxu0 %v1201
        %1597 = vmatprep.subr.bf16.mxu0 0
        %1598 = vmatpush2.bf16.msra.mxu0 %v1198
        %1599 = vmatprep.mubr.bf16.mxu0 %v386
        %1600 = vmatmul.mubr.bf16.gmra.mxu0 %v385
        %v1601 = vpop.f32.mrf.mxu0
        %v1602 = vadd.f32 %v1562, %v1601
        %v1603 = vpop.f32.mrf.mxu0
        %v1604 = vpop.f32.mrf.mxu0
        %v1605 = vpop.f32.mrf.mxu0
        %1606 = vdwg.mxu0
        %v1607 = vmax.f32 %v1481, 0.0
        %v1608 = vmax.f32 %v1483, 0.0
        %v1609 = vmax.f32 %v1602, 0.0
        %v1610 = vpack.c.bf16 %v1607, %v1607
        %v1611 = vpack.c.bf16 %v1608, %v1608
        %v1612 = vpack.c.bf16 %v1609, %v1609
        %v1613 = vld [vmem:[%s321] sm:$0xf]
        %v1614 = vld [vmem:[%s321 + $0x4] sm:$0xf]
        %v1615 = vld [vmem:[%s321 + $0x8] sm:$0xf]
        %v1616 = vld [vmem:[%s321 + $0xc] sm:$0xf]
        %v1617 = vld [vmem:[%s321 + $0x10] sm:$0xf]
        %v1618 = vld [vmem:[%s321 + $0x14] sm:$0xf]
        %v1619 = vld [vmem:[%s321 + $0x18] sm:$0xf]
        %v1620 = vld [vmem:[%s321 + $0x1c] sm:$0xf]
        %v1621 = vld [vmem:[%s321 + $0x20] sm:$0xf]
        %v1622 = vld [vmem:[%s321 + $0x24] sm:$0xf]
        %v1623 = vld [vmem:[%s321 + $0x28] sm:$0xf]
        %v1624 = vld [vmem:[%s321 + $0x2c] sm:$0xf]
        %v1625 = vld [vmem:[%s321 + $0x30] sm:$0xf]
        %v1626 = vld [vmem:[%s321 + $0x34] sm:$0xf]
        %v1627 = vld [vmem:[%s321 + $0x38] sm:$0xf]
        %v1628 = vld [vmem:[%s321 + $0x3c] sm:$0xf]
        %v1629 = vld [vmem:[%s321 + $0x40] sm:$0xf]
        %v1630 = vld [vmem:[%s321 + $0x44] sm:$0xf]
        %v1631 = vld [vmem:[%s321 + $0x48] sm:$0xf]
        %v1632 = vld [vmem:[%s321 + $0x4c] sm:$0xf]
        %v1633 = vld [vmem:[%s321 + $0x50] sm:$0xf]
        %v1634 = vld [vmem:[%s321 + $0x54] sm:$0xf]
        %v1635 = vld [vmem:[%s321 + $0x58] sm:$0xf]
        %v1636 = vld [vmem:[%s321 + $0x5c] sm:$0xf]
        %v1637 = vld [vmem:[%s321 + $0x60] sm:$0xf]
        %v1638 = vld [vmem:[%s321 + $0x64] sm:$0xf]
        %v1639 = vld [vmem:[%s321 + $0x68] sm:$0xf]
        %v1640 = vld [vmem:[%s321 + $0x6c] sm:$0xf]
        %v1641 = vld [vmem:[%s321 + $0x70] sm:$0xf]
        %v1642 = vld [vmem:[%s321 + $0x74] sm:$0xf]
        %v1643 = vld [vmem:[%s321 + $0x78] sm:$0xf]
        %v1644 = vld [vmem:[%s321 + $0x7c] sm:$0xf]
        %v1645 = vld [vmem:[%s321 + $0x80] sm:$0xf]
        %v1646 = vld [vmem:[%s321 + $0x84] sm:$0xf]
        %v1647 = vld [vmem:[%s321 + $0x88] sm:$0xf]
        %v1648 = vld [vmem:[%s321 + $0x8c] sm:$0xf]
        %v1649 = vld [vmem:[%s321 + $0x90] sm:$0xf]
        %v1650 = vld [vmem:[%s321 + $0x94] sm:$0xf]
        %v1651 = vld [vmem:[%s321 + $0x98] sm:$0xf]
        %v1652 = vld [vmem:[%s321 + $0x9c] sm:$0xf]
        %v1653 = vld [vmem:[%s321 + $0xa0] sm:$0xf]
        %v1654 = vld [vmem:[%s321 + $0xa4] sm:$0xf]
        %v1655 = vld [vmem:[%s321 + $0xa8] sm:$0xf]
        %v1656 = vld [vmem:[%s321 + $0xac] sm:$0xf]
        %v1657 = vld [vmem:[%s321 + $0xb0] sm:$0xf]
        %v1658 = vld [vmem:[%s321 + $0xb4] sm:$0xf]
        %v1659 = vld [vmem:[%s321 + $0xb8] sm:$0xf]
        %v1660 = vld [vmem:[%s321 + $0xbc] sm:$0xf]
        %p1661 = scmp.eq.s32.totalorder %s28, 0
        %s1662 = scalar_select %p1661, 1, 0
        %s1663 = scvt.s32.f32 %s1662
        %v1664 = vld [vmem:[#allocation9] sm:$0x1]
        %v1665 = vstv %s1663
        %v1666 = vmul.f32 %v1665, %v1664
        %v1668 = vlaneseq
        %v1669 = vshrl.u32 %v1668, 7
        %v1670 = vsub.s32 0, %v1669
        %v1671 = vrot.slane %v1666, %v1670
        %v1721 = vunpack.c.l.b16 %v1613
        %v1722 = vunpack.c.l.b16 %v1614
        %v1723 = vunpack.c.l.b16 %v1615
        %v1724 = vunpack.c.l.b16 %v1616
        %v1725 = vunpack.c.l.b16 %v1617
        %v1726 = vunpack.c.l.b16 %v1618
        %v1727 = vunpack.c.l.b16 %v1619
        %v1728 = vunpack.c.l.b16 %v1620
        %v1729 = vunpack.c.l.b16 %v1621
        %v1730 = vunpack.c.l.b16 %v1622
        %v1731 = vunpack.c.l.b16 %v1623
        %v1732 = vunpack.c.l.b16 %v1624
        %v1733 = vunpack.c.l.b16 %v1625
        %v1734 = vunpack.c.l.b16 %v1626
        %v1735 = vunpack.c.l.b16 %v1627
        %v1736 = vunpack.c.l.b16 %v1628
        %v1737 = vunpack.c.l.b16 %v1629
        %v1738 = vunpack.c.l.b16 %v1630
        %v1739 = vunpack.c.l.b16 %v1631
        %v1740 = vunpack.c.l.b16 %v1632
        %v1741 = vunpack.c.l.b16 %v1633
        %v1742 = vunpack.c.l.b16 %v1634
        %v1743 = vunpack.c.l.b16 %v1635
        %v1744 = vunpack.c.l.b16 %v1636
        %v1745 = vunpack.c.l.b16 %v1637
        %v1746 = vunpack.c.l.b16 %v1638
        %v1747 = vunpack.c.l.b16 %v1639
        %v1748 = vunpack.c.l.b16 %v1640
        %v1749 = vunpack.c.l.b16 %v1641
        %v1750 = vunpack.c.l.b16 %v1642
        %v1751 = vunpack.c.l.b16 %v1643
        %v1752 = vunpack.c.l.b16 %v1644
        %v1753 = vunpack.c.l.b16 %v1645
        %v1754 = vunpack.c.l.b16 %v1646
        %v1755 = vunpack.c.l.b16 %v1647
        %v1756 = vunpack.c.l.b16 %v1648
        %v1757 = vunpack.c.l.b16 %v1649
        %v1758 = vunpack.c.l.b16 %v1650
        %v1759 = vunpack.c.l.b16 %v1651
        %v1760 = vunpack.c.l.b16 %v1652
        %v1761 = vunpack.c.l.b16 %v1653
        %v1762 = vunpack.c.l.b16 %v1654
        %v1763 = vunpack.c.l.b16 %v1655
        %v1764 = vunpack.c.l.b16 %v1656
        %v1765 = vunpack.c.l.b16 %v1657
        %v1766 = vunpack.c.l.b16 %v1658
        %v1767 = vunpack.c.l.b16 %v1659
        %v1768 = vunpack.c.l.b16 %v1660
        %v1769 = vpack.c.b16 %v1722, %v1721
        %v1770 = vpack.c.b16 %v1724, %v1723
        %v1771 = vpack.c.b16 %v1726, %v1725
        %v1772 = vpack.c.b16 %v1728, %v1727
        %v1773 = vpack.c.b16 %v1730, %v1729
        %v1774 = vpack.c.b16 %v1732, %v1731
        %v1775 = vpack.c.b16 %v1734, %v1733
        %v1776 = vpack.c.b16 %v1736, %v1735
        %v1777 = vpack.c.b16 %v1738, %v1737
        %v1778 = vpack.c.b16 %v1740, %v1739
        %v1779 = vpack.c.b16 %v1742, %v1741
        %v1780 = vpack.c.b16 %v1744, %v1743
        %v1781 = vpack.c.b16 %v1746, %v1745
        %v1782 = vpack.c.b16 %v1748, %v1747
        %v1783 = vpack.c.b16 %v1750, %v1749
        %v1784 = vpack.c.b16 %v1752, %v1751
        %v1785 = vpack.c.b16 %v1754, %v1753
        %v1786 = vpack.c.b16 %v1756, %v1755
        %v1787 = vpack.c.b16 %v1758, %v1757
        %v1788 = vpack.c.b16 %v1760, %v1759
        %v1789 = vpack.c.b16 %v1762, %v1761
        %v1790 = vpack.c.b16 %v1764, %v1763
        %v1791 = vpack.c.b16 %v1766, %v1765
        %v1792 = vpack.c.b16 %v1768, %v1767
        %1817 = vmatprep.subr.bf16.mxu0 0
        %1818 = vmatpush1.bf16.msra.mxu0 %v1776
        %1819 = vmatprep.subr.bf16.mxu0 0
        %1820 = vmatpush1.bf16.msra.mxu0 %v1775
        %1821 = vmatprep.subr.bf16.mxu0 0
        %1822 = vmatpush1.bf16.msra.mxu0 %v1774
        %1823 = vmatprep.subr.bf16.mxu0 0
        %1824 = vmatpush1.bf16.msra.mxu0 %v1773
        %1825 = vmatprep.subr.bf16.mxu0 0
        %1826 = vmatpush1.bf16.msra.mxu0 %v1772
        %1827 = vmatprep.subr.bf16.mxu0 0
        %1828 = vmatpush1.bf16.msra.mxu0 %v1771
        %1829 = vmatprep.subr.bf16.mxu0 0
        %1830 = vmatpush1.bf16.msra.mxu0 %v1770
        %1831 = vmatprep.subr.bf16.mxu0 0
        %1832 = vmatpush1.bf16.msra.mxu0 %v1769
        %1833 = vmatprep.subr.bf16.mxu0 0
        %1834 = vmatpush2.bf16.msra.mxu0 %v1784
        %1835 = vmatprep.subr.bf16.mxu0 0
        %1836 = vmatpush2.bf16.msra.mxu0 %v1783
        %1837 = vmatprep.subr.bf16.mxu0 0
        %1838 = vmatpush2.bf16.msra.mxu0 %v1782
        %1839 = vmatprep.subr.bf16.mxu0 0
        %1840 = vmatpush2.bf16.msra.mxu0 %v1781
        %1841 = vmatprep.subr.bf16.mxu0 0
        %1842 = vmatpush2.bf16.msra.mxu0 %v1780
        %1843 = vmatprep.subr.bf16.mxu0 0
        %1844 = vmatpush2.bf16.msra.mxu0 %v1779
        %1845 = vmatprep.subr.bf16.mxu0 0
        %1846 = vmatpush2.bf16.msra.mxu0 %v1778
        %1847 = vmatprep.subr.bf16.mxu0 0
        %1848 = vmatpush2.bf16.msra.mxu0 %v1777
        %1849 = vmatprep.mubr.bf16.mxu0 %v1611
        %1850 = vmatmul.mubr.bf16.gmra.mxu0 %v1610
        %v1851 = vpop.f32.mrf.mxu0
        %v1852 = vadd.f32 %v1671, %v1851
        %v1853 = vpop.f32.mrf.mxu0
        %v1854 = vpop.f32.mrf.mxu0
        %v1855 = vpop.f32.mrf.mxu0
        %1856 = vdwg.mxu0
        %1857 = vmatprep.subr.bf16.mxu0 0
        %1858 = vmatpush1.bf16.msra.mxu0 %v1792
        %1859 = vmatprep.subr.bf16.mxu0 0
        %1860 = vmatpush1.bf16.msra.mxu0 %v1791
        %1861 = vmatprep.subr.bf16.mxu0 0
        %1862 = vmatpush1.bf16.msra.mxu0 %v1790
        %1863 = vmatprep.subr.bf16.mxu0 0
        %1864 = vmatpush1.bf16.msra.mxu0 %v1789
        %1865 = vmatprep.subr.bf16.mxu0 0
        %1866 = vmatpush1.bf16.msra.mxu0 %v1788
        %1867 = vmatprep.subr.bf16.mxu0 0
        %1868 = vmatpush1.bf16.msra.mxu0 %v1787
        %1869 = vmatprep.subr.bf16.mxu0 0
        %1870 = vmatpush1.bf16.msra.mxu0 %v1786
        %1871 = vmatprep.subr.bf16.mxu0 0
        %1872 = vmatpush1.bf16.msra.mxu0 %v1785
        %1873 = vmatprep.subr.bf16.mxu0 0
        %1874 = vmatpush2.bf16.msra.mxu0 0
        %1875 = vmatprep.subr.bf16.mxu0 0
        %1876 = vmatpush2.bf16.msra.mxu0 0
        %1877 = vmatprep.subr.bf16.mxu0 0
        %1878 = vmatpush2.bf16.msra.mxu0 0
        %1879 = vmatprep.subr.bf16.mxu0 0
        %1880 = vmatpush2.bf16.msra.mxu0 0
        %1881 = vmatprep.subr.bf16.mxu0 0
        %1882 = vmatpush2.bf16.msra.mxu0 0
        %1883 = vmatprep.subr.bf16.mxu0 0
        %1884 = vmatpush2.bf16.msra.mxu0 0
        %1885 = vmatprep.subr.bf16.mxu0 0
        %1886 = vmatpush2.bf16.msra.mxu0 0
        %1887 = vmatprep.subr.bf16.mxu0 0
        %1888 = vmatpush2.bf16.msra.mxu0 0
        %1889 = vmatprep.mubr.bf16.mxu0 0
        %1890 = vmatmul.mubr.bf16.gmra.mxu0 %v1612
        %v1891 = vpop.f32.mrf.mxu0
        %v1892 = vadd.f32 %v1852, %v1891
        %v1893 = vpop.f32.mrf.mxu0
        %v1894 = vpop.f32.mrf.mxu0
        %v1895 = vpop.f32.mrf.mxu0
        %1896 = vdwg.mxu0
        %1897 = vst [vmem:[%s373] sm:$0xff] %v1892
        %p1898 = scmp.lt.s32.totalorder %s28, 1
        %s1899 = scalar_select %p1898, %s28, 1
        %p1900 = scmp.lt.s32.totalorder %s27, 0
        %s1901 = scalar_select %p1900, %s27, 0
        %s1902 = sadd.s32 %s1901, %s1899
        %s1903 = smul.addr %s1902, 8
        %s1904 = scalar_lea.vmem %s5, %s1903
        // Predicated region
        $region61: #{decode_multicat.1} parent=39 // pred_check
          %p1905 = pneg %p180
        $region62: #{decode_multicat.1} parent=39 // pred_check_branch
          %1907 = sbr.rel (%p1905) target = $region64
        $region63: #{decode_multicat.1} parent=39 // pred_region
          _
        $region64: #{decode_multicat.1} parent=39 // pred_fallthru
          _
      $region40: #{decode_multicat.1} parent=5 // pred_fallthru
        _
      %p1908 = scmp.le.s32.totalorder 2, %s18
      // Predicated region
      $region65: #{decode_multicat.1} parent=5 // pred_check
        %p1909 = pneg %p1908
      $region66: #{decode_multicat.1} parent=5 // pred_check_branch
        %1911 = sbr.rel (%p1909) target = $region68
      $region67: #{decode_multicat.1} parent=5 // pred_region
        %s1912 = ssub.s32 %s18, 2
        // Predicated region
        $region69: #{decode_multicat.1} parent=67 // pred_check
          %p1913 = pneg %p186
        $region70: #{decode_multicat.1} parent=67 // pred_check_branch
          %1915 = sbr.rel (%p1913) target = $region72
        $region71: #{decode_multicat.1} parent=67 // pred_region
          %p1916 = scmp.lt.s32.totalorder %s30, 1
          %s1917 = scalar_select %p1916, %s30, 1
          %p1918 = scmp.lt.s32.totalorder %s29, 0
          %s1919 = scalar_select %p1918, %s29, 0
          %s1920 = sadd.s32 %s1919, %s1917
          %s1921 = smul.addr %s1920, 8
          %s1922 = scalar_lea.vmem %s5, %s1921
        $region72: #{decode_multicat.1} parent=67 // pred_fallthru
          _
      $region68: #{decode_multicat.1} parent=5 // pred_fallthru
        _
    $region6: #{decode_multicat.1} parent=1 // loop_footer
      %s22 = sadd.s32 1, %s18
    $region7: #{decode_multicat.1} parent=1 // loop_footer_branch
      %17 = sbr.rel target = $region3
    $region8: #{decode_multicat.1} parent=1 // loop_exit
      _
    %1923 = vsyncpa [#allocation3], 1
    %s1924 = scalar_lea.sflag [#allocation3], 1
    %1925 = vsyncpa %s1924, 1
    %1926 = vsyncpa [#allocation5], 1
    %s1927 = scalar_lea.sflag [#allocation5], 1
    %1928 = vsyncpa %s1927, 1
    %1929 = vsyncpa [#allocation8], 1
    %s1930 = scalar_lea.sflag [#allocation8], 1
    %1931 = vsyncpa %s1930, 1

</llo_original>
